<compile_context>
chip_gen: v7x
topology: tpu7x:2x2x1
jax: 0.10.0
libtpu: 0.0.40
codegen_flags: <defaults>
</compile_context>

<pallas_src>
import jax
import jax.numpy as jnp
from jax.experimental import pallas as pl
from jax.experimental.pallas import tpu as pltpu

# "args" equivalent (scaled-down synthetic config):
OPERATION = "concat"     # 'concat' or 'add'
NUM_LAYERS = 2           # args.num_layers (Linear+ReLU blocks before the head)
HIDDEN_DIM = 32          # args.hidden_dim (logical; padded to 128 lanes in-kernel)
FEAT_DIM = 128           # per-modality encoder output dim (stand-in for 512/1024)

LANES = 128              # TPU lane width
H_PAD = 128              # HIDDEN_DIM padded up to a full lane group
TILE_K = 512             # K tile for the image-encoder matmul (size per-gen at real dims)


def _round_up(x, m):
    return (x + m - 1) // m * m


def _big_batch_tile():
    """Batch tile for B > 128: 256 fills the 2x256x256 MXU on v6e/v7x."""
    try:
        kind = jax.devices()[0].device_kind.lower()
    except Exception:
        kind = ""
    if any(v in kind for v in ("v2", "v3", "v4", "v5")):
        return 128           # 128-wide MXUs
    return 256


def _clip_kernel(img_ref, txt_ref, wimg_ref, wtxt_ref,
                 w0i_ref, w0t_ref, b0_ref, w1_ref, b1_ref,
                 w2_ref, b2_ref, out_ref, acc_ref):
    f32, bf16 = jnp.float32, jnp.bfloat16
    k = pl.program_id(1)

    # --- image encoder matmul, K-tiled with an f32 VMEM accumulator ----------
    @pl.when(k == 0)
    def _():
        acc_ref[...] = jnp.zeros_like(acc_ref)

    acc_ref[...] += jnp.dot(img_ref[...], wimg_ref[...],
                            preferred_element_type=f32)

    # --- fusion + MLP head only on the last K step ----------------------------
    @pl.when(k == pl.num_programs(1) - 1)
    def _():
        img_feat = acc_ref[...]
        txt_feat = jnp.dot(txt_ref[...], wtxt_ref[...],
                           preferred_element_type=f32)

        # fusion + first Linear, fused (no cross-lane concat):
        #   concat: [img | txt] @ [[w0_img],[w0_txt]] == img@w0_img + txt@w0_txt
        #   add   : (img + txt) @ w0                  == img@w0     + txt@w0
        h = (jnp.dot(img_feat.astype(bf16), w0i_ref[...],
                     preferred_element_type=f32)
             + jnp.dot(txt_feat.astype(bf16), w0t_ref[...],
                       preferred_element_type=f32)
             + b0_ref[...])
        h = jnp.maximum(h, 0.0)                                 # ReLU (f32, VPU)

        h = jnp.dot(h.astype(bf16), w1_ref[...],
                    preferred_element_type=f32) + b1_ref[...]
        h = jnp.maximum(h, 0.0)

        # Final Linear(H->1), computed transposed so the result is a single
        # lane-dense row: w2 (8, H_pad) @ h^T (H_pad, tile_b) -> (8, tile_b).
        # Only row 0 of w2 is real; rows 1..7 are zero padding.
        h_bf = h.astype(bf16)
        logits_t = jnp.dot(w2_ref[...], h_bf.T, preferred_element_type=f32)

        # One sigmoid vreg row per tile; unmasked lane-dense store.
        out_ref[...] = jax.nn.sigmoid(logits_t[0:1, :] + b2_ref[...])


def custom_clip_forward(image, text, params, operation=OPERATION):
    """image: (B, C, H, W) float32 NCHW; text: (B, S) float32. Returns (B, 1)."""
    B = image.shape[0]
    img_flat = image.reshape(B, -1)                 # plain-JAX glue (flatten NCHW)
    img_d = img_flat.shape[1]
    txt_d = text.shape[1]
    feat = params["w_img"].shape[1]
    hid = params["w0"].shape[1]

    # --- adaptive batch tiling -------------------------------------------------
    if B <= 128:
        tile_b = _round_up(max(B, 16), 16)   # bf16 sublane pack; no 16x waste at B=8
    else:
        tile_b = _big_batch_tile()
    b_pad = _round_up(B, tile_b)
    nb = b_pad // tile_b
    # NOTE: on v7x megacore only helps when nb >= 2 (>=2 parallel grid steps).

    # --- K tiling for the image-encoder matmul ---------------------------------
    img_d_pad = _round_up(img_d, LANES)
    tile_k = min(img_d_pad, TILE_K)
    img_d_pad = _round_up(img_d_pad, tile_k)
    nk = img_d_pad // tile_k
    txt_d_pad = _round_up(txt_d, LANES)     # full lane group feeding the MXU

    bf16 = jnp.bfloat16
    img_p = jnp.pad(img_flat, ((0, b_pad - B), (0, img_d_pad - img_d))).astype(bf16)
    txt_p = jnp.pad(text, ((0, b_pad - B), (0, txt_d_pad - txt_d))).astype(bf16)
    w_img_p = jnp.pad(params["w_img"], ((0, img_d_pad - img_d), (0, 0))).astype(bf16)
    w_txt_p = jnp.pad(params["w_txt"], ((0, txt_d_pad - txt_d), (0, 0))).astype(bf16)

    # --- split w0 so the kernel never concatenates along lanes -----------------
    if operation == "concat":
        w0_img, w0_txt = params["w0"][:feat], params["w0"][feat:]
    else:  # 'add'
        w0_img = w0_txt = params["w0"]

    # --- pad hidden dim to 128 lanes (zero pads are exact no-ops) --------------
    def pad_cols(w):
        return jnp.pad(w, ((0, 0), (0, H_PAD - w.shape[1])))

    w0_img_p = pad_cols(w0_img).astype(bf16)
    w0_txt_p = pad_cols(w0_txt).astype(bf16)
    b0_p = pad_cols(params["b0"])
    w1_p = jnp.pad(params["w1"],
                   ((0, H_PAD - hid), (0, H_PAD - hid))).astype(bf16)
    b1_p = pad_cols(params["b1"])
    # w2 as an (8, H_PAD) row block: row 0 real, rows 1..7 zero.
    w2_p = jnp.pad(params["w2"].reshape(1, hid),
                   ((0, 7), (0, H_PAD - hid))).astype(bf16)
    b2_slab = jnp.broadcast_to(params["b2"].reshape(1, 1),
                               (1, tile_b)).astype(jnp.float32)

    args = (img_p, txt_p, w_img_p, w_txt_p, w0_img_p, w0_txt_p, b0_p,
            w1_p, b1_p, w2_p, b2_slab)

    def full(a):   # fetched once (constant block index across the grid)
        return pl.BlockSpec(a.shape, lambda b, k: (0, 0))

    in_specs = [
        pl.BlockSpec((tile_b, tile_k), lambda b, k: (b, k)),      # image K tiles
        pl.BlockSpec((tile_b, txt_d_pad), lambda b, k: (b, 0)),   # text
        pl.BlockSpec((tile_k, feat), lambda b, k: (k, 0)),        # w_img K tiles
        full(w_txt_p), full(w0_img_p), full(w0_txt_p), full(b0_p),
        full(w1_p), full(b1_p), full(w2_p), full(b2_slab),
    ]
    # One lane-dense (1, tile_b) row per batch tile.
    out_specs = pl.BlockSpec((1, tile_b), lambda b, k: (0, b))
    out_shape = jax.ShapeDtypeStruct((1, b_pad), jnp.float32)

    grid = (nb, nk)

    flops = 2 * b_pad * (img_d_pad * feat + txt_d_pad * feat
                         + 2 * feat * H_PAD + H_PAD * H_PAD + 8 * H_PAD)
    bytes_accessed = (sum(int(a.size) * a.dtype.itemsize for a in args)
                      + b_pad * 4)
    cost = pl.CostEstimate(flops=int(flops),
                           transcendentals=int(b_pad),
                           bytes_accessed=int(bytes_accessed))

    out_pad = pl.pallas_call(
        _clip_kernel,
        out_shape=out_shape,
        grid=grid,
        in_specs=in_specs,
        out_specs=out_specs,
        scratch_shapes=[pltpu.VMEM((tile_b, feat), jnp.float32)],  # img_feat acc
        compiler_params=pltpu.CompilerParams(
            dimension_semantics=("parallel", "arbitrary")),
        cost_estimate=cost,
    )(*args)

    return out_pad[0, :B].reshape(B, 1)   # strip batch padding (plain-JAX glue)


def init_params(key, img_in_dim, txt_in_dim, feat_dim, hidden_dim, operation):
    fused_dim = 2 * feat_dim if operation == "concat" else feat_dim
    ks = jax.random.split(key, 8)
    s = 0.02
    return {
        # synthetic encoder projections (stand-ins for the CLIP towers)
        "w_img": s * jax.random.normal(ks[0], (img_in_dim, feat_dim), jnp.float32),
        "w_txt": s * jax.random.normal(ks[1], (txt_in_dim, feat_dim), jnp.float32),
        # fc head: Linear(fused, H) ReLU, Linear(H, H) ReLU, Linear(H, 1) Sigmoid
        "w0": s * jax.random.normal(ks[2], (fused_dim, hidden_dim), jnp.float32),
        "b0": jnp.zeros((1, hidden_dim), jnp.float32),
        "w1": s * jax.random.normal(ks[3], (hidden_dim, hidden_dim), jnp.float32),
        "b1": jnp.zeros((1, hidden_dim), jnp.float32),
        "w2": s * jax.random.normal(ks[4], (hidden_dim, 1), jnp.float32),
        "b2": jnp.zeros((1, 1), jnp.float32),
    }


def _reference(image, text, params, operation):
    """Plain-JAX reference mirroring the kernel's bf16-in / f32-acc math."""
    bf16, f32 = jnp.bfloat16, jnp.float32

    def mm(a, w):
        return jnp.dot(a.astype(bf16), w.astype(bf16), preferred_element_type=f32)

    B = image.shape[0]
    img_feat = mm(image.reshape(B, -1), params["w_img"])
    txt_feat = mm(text, params["w_txt"])
    if operation == "concat":
        fused = jnp.concatenate([img_feat, txt_feat], axis=1)
    else:
        fused = img_feat + txt_feat
    h = jnp.maximum(mm(fused, params["w0"]) + params["b0"], 0.0)
    h = jnp.maximum(mm(h, params["w1"]) + params["b1"], 0.0)
    return jax.nn.sigmoid(mm(h, params["w2"]) + params["b2"])


if __name__ == "__main__":
    key = jax.random.PRNGKey(0)
    k_img, k_txt, k_par = jax.random.split(key, 3)

    C, H, W = 4, 16, 16           # image (NCHW)
    S = 8                         # text "sequence" feature length

    ok = True
    # (operation, batch): small-batch concat, small-batch add, and a large
    # batch that exercises multiple batch tiles + the K-reduction axis.
    for op, B in (("concat", 8), ("add", 8), ("concat", 300)):
        image = jax.random.normal(k_img, (B, C, H, W), jnp.float32)
        text = jax.random.normal(k_txt, (B, S), jnp.float32)
        params = init_params(k_par, C * H * W, S, FEAT_DIM, HIDDEN_DIM, op)

        out = custom_clip_forward(image, text, params, operation=op)
        out = jax.block_until_ready(out)
        ref = _reference(image, text, params, op)

        assert out.shape == (B, 1), (op, B, out.shape)
        if not jnp.allclose(out, ref, atol=2e-4, rtol=2e-4):
            ok = False
            print(f"MISMATCH op={op} B={B} "
                  f"max_abs_err={float(jnp.max(jnp.abs(out - ref))):.3e}")

    if ok:
        print("KERNEL_OK")
</pallas_src>

<mosaic_0001>
module attributes {stable_mosaic.version = 11 : i64} {
  func.func @_clip_kernel(%arg0: i32, %arg1: i32, %arg2: memref<16x512xbf16, #tpu.memory_space<vmem>>, %arg3: memref<16x128xbf16, #tpu.memory_space<vmem>>, %arg4: memref<512x128xbf16, #tpu.memory_space<vmem>>, %arg5: memref<128x128xbf16, #tpu.memory_space<vmem>>, %arg6: memref<128x128xbf16, #tpu.memory_space<vmem>>, %arg7: memref<128x128xbf16, #tpu.memory_space<vmem>>, %arg8: memref<1x128xf32, #tpu.memory_space<vmem>>, %arg9: memref<128x128xbf16, #tpu.memory_space<vmem>>, %arg10: memref<1x128xf32, #tpu.memory_space<vmem>>, %arg11: memref<8x128xbf16, #tpu.memory_space<vmem>>, %arg12: memref<1x16xf32, #tpu.memory_space<vmem>>, %arg13: memref<1x16xf32, #tpu.memory_space<vmem>>, %arg14: memref<16x128xf32, #tpu.memory_space<vmem>>) attributes {dimension_semantics = [#tpu.dimension_semantics<parallel>, #tpu.dimension_semantics<arbitrary>], iteration_bounds = array<i64: 1, 2>, scalar_prefetch = 0 : i64, scratch_operands = 1 : i64, tpu.core_type = #tpu.core_type<tc>, window_params = [{transform_indices = @transform_0, window_bounds = array<i64: 16, 512>}, {transform_indices = @transform_1, window_bounds = array<i64: 16, 128>}, {transform_indices = @transform_2, window_bounds = array<i64: 512, 128>}, {pipeline_mode = #tpu.pipeline_mode<synchronous>, transform_indices = @transform_3, window_bounds = array<i64: 128, 128>}, {pipeline_mode = #tpu.pipeline_mode<synchronous>, transform_indices = @transform_4, window_bounds = array<i64: 128, 128>}, {pipeline_mode = #tpu.pipeline_mode<synchronous>, transform_indices = @transform_5, window_bounds = array<i64: 128, 128>}, {pipeline_mode = #tpu.pipeline_mode<synchronous>, transform_indices = @transform_6, window_bounds = array<i64: 1, 128>}, {pipeline_mode = #tpu.pipeline_mode<synchronous>, transform_indices = @transform_7, window_bounds = array<i64: 128, 128>}, {pipeline_mode = #tpu.pipeline_mode<synchronous>, transform_indices = @transform_8, window_bounds = array<i64: 1, 128>}, {pipeline_mode = #tpu.pipeline_mode<synchronous>, transform_indices = @transform_9, window_bounds = array<i64: 8, 128>}, {pipeline_mode = #tpu.pipeline_mode<synchronous>, transform_indices = @transform_10, window_bounds = array<i64: 1, 16>}, {transform_indices = @transform_11, window_bounds = array<i64: 1, 16>}]} {
    %c0_i32 = arith.constant 0 : i32
    %0 = arith.cmpi eq, %arg1, %c0_i32 : i32
    %1 = arith.extui %0 : i1 to i32
    %c0_i32_0 = arith.constant 0 : i32
    %2 = arith.cmpi ne, %1, %c0_i32_0 : i32
    scf.if %2 {
      %cst_9 = arith.constant 0.000000e+00 : f32
      %12 = vector.broadcast %cst_9 : f32 to vector<16x128xf32>
      %c0_10 = arith.constant 0 : index
      %c0_11 = arith.constant 0 : index
      %13 = vector.load %arg14[%c0_10, %c0_11] : memref<16x128xf32, #tpu.memory_space<vmem>>, vector<16x128xf32>
      tpu.vector_store %arg14[%c0_10, %c0_11], %12 {strides = array<i32>} : memref<16x128xf32, #tpu.memory_space<vmem>>, vector<16x128xf32>,
    } else {
    }
    %c0 = arith.constant 0 : index
    %c0_1 = arith.constant 0 : index
    %3 = vector.load %arg14[%c0, %c0_1] : memref<16x128xf32, #tpu.memory_space<vmem>>, vector<16x128xf32>
    %c0_2 = arith.constant 0 : index
    %c0_3 = arith.constant 0 : index
    %4 = vector.load %arg2[%c0_2, %c0_3] : memref<16x512xbf16, #tpu.memory_space<vmem>>, vector<16x512xbf16>
    %c0_4 = arith.constant 0 : index
    %c0_5 = arith.constant 0 : index
    %5 = vector.load %arg4[%c0_4, %c0_5] : memref<512x128xbf16, #tpu.memory_space<vmem>>, vector<512x128xbf16>
    %cst = arith.constant dense<0.000000e+00> : vector<16x128xf32>
    %6 = tpu.matmul %4, %5, %cst {dimension_numbers = #tpu.dot_dimension_numbers<[1], [0], [0], [1], [0, 0, 1, 1], [], []>} : vector<16x512xbf16>, vector<512x128xbf16>, vector<16x128xf32> -> vector<16x128xf32>
    %7 = arith.addf %3, %6 : vector<16x128xf32>
    %c0_6 = arith.constant 0 : index
    %c0_7 = arith.constant 0 : index
    %8 = vector.load %arg14[%c0_6, %c0_7] : memref<16x128xf32, #tpu.memory_space<vmem>>, vector<16x128xf32>
    tpu.vector_store %arg14[%c0_6, %c0_7], %7 {strides = array<i32>} : memref<16x128xf32, #tpu.memory_space<vmem>>, vector<16x128xf32>,
    %c1_i32 = arith.constant 1 : i32
    %9 = arith.cmpi eq, %arg1, %c1_i32 : i32
    %10 = arith.extui %9 : i1 to i32
    %c0_i32_8 = arith.constant 0 : i32
    %11 = arith.cmpi ne, %10, %c0_i32_8 : i32
    scf.if %11 {
      %c0_9 = arith.constant 0 : index
      %c0_10 = arith.constant 0 : index
      %12 = vector.load %arg14[%c0_9, %c0_10] : memref<16x128xf32, #tpu.memory_space<vmem>>, vector<16x128xf32>
      %c0_11 = arith.constant 0 : index
      %c0_12 = arith.constant 0 : index
      %13 = vector.load %arg3[%c0_11, %c0_12] : memref<16x128xbf16, #tpu.memory_space<vmem>>, vector<16x128xbf16>
      %c0_13 = arith.constant 0 : index
      %c0_14 = arith.constant 0 : index
      %14 = vector.load %arg5[%c0_13, %c0_14] : memref<128x128xbf16, #tpu.memory_space<vmem>>, vector<128x128xbf16>
      %cst_15 = arith.constant dense<0.000000e+00> : vector<16x128xf32>
      %15 = tpu.matmul %13, %14, %cst_15 {dimension_numbers = #tpu.dot_dimension_numbers<[1], [0], [0], [1], [0, 0, 1, 1], [], []>} : vector<16x128xbf16>, vector<128x128xbf16>, vector<16x128xf32> -> vector<16x128xf32>
      %16 = arith.truncf %12 : vector<16x128xf32> to vector<16x128xbf16>
      %c0_16 = arith.constant 0 : index
      %c0_17 = arith.constant 0 : index
      %17 = vector.load %arg6[%c0_16, %c0_17] : memref<128x128xbf16, #tpu.memory_space<vmem>>, vector<128x128xbf16>
      %cst_18 = arith.constant dense<0.000000e+00> : vector<16x128xf32>
      %18 = tpu.matmul %16, %17, %cst_18 {dimension_numbers = #tpu.dot_dimension_numbers<[1], [0], [0], [1], [0, 0, 1, 1], [], []>} : vector<16x128xbf16>, vector<128x128xbf16>, vector<16x128xf32> -> vector<16x128xf32>
      %19 = arith.truncf %15 : vector<16x128xf32> to vector<16x128xbf16>
      %c0_19 = arith.constant 0 : index
      %c0_20 = arith.constant 0 : index
      %20 = vector.load %arg7[%c0_19, %c0_20] : memref<128x128xbf16, #tpu.memory_space<vmem>>, vector<128x128xbf16>
      %cst_21 = arith.constant dense<0.000000e+00> : vector<16x128xf32>
      %21 = tpu.matmul %19, %20, %cst_21 {dimension_numbers = #tpu.dot_dimension_numbers<[1], [0], [0], [1], [0, 0, 1, 1], [], []>} : vector<16x128xbf16>, vector<128x128xbf16>, vector<16x128xf32> -> vector<16x128xf32>
      %22 = arith.addf %18, %21 : vector<16x128xf32>
      %c0_22 = arith.constant 0 : index
      %c0_23 = arith.constant 0 : index
      %23 = vector.load %arg8[%c0_22, %c0_23] : memref<1x128xf32, #tpu.memory_space<vmem>>, vector<1x128xf32>
      %24 = vector.broadcast %23 : vector<1x128xf32> to vector<16x128xf32>
      %25 = arith.addf %22, %24 : vector<16x128xf32>
      %cst_24 = arith.constant 0.000000e+00 : f32
      %26 = vector.broadcast %cst_24 : f32 to vector<16x128xf32>
      %27 = arith.maximumf %25, %26 : vector<16x128xf32>
      %28 = arith.truncf %27 : vector<16x128xf32> to vector<16x128xbf16>
      %c0_25 = arith.constant 0 : index
      %c0_26 = arith.constant 0 : index
      %29 = vector.load %arg9[%c0_25, %c0_26] : memref<128x128xbf16, #tpu.memory_space<vmem>>, vector<128x128xbf16>
      %cst_27 = arith.constant dense<0.000000e+00> : vector<16x128xf32>
      %30 = tpu.matmul %28, %29, %cst_27 {dimension_numbers = #tpu.dot_dimension_numbers<[1], [0], [0], [1], [0, 0, 1, 1], [], []>} : vector<16x128xbf16>, vector<128x128xbf16>, vector<16x128xf32> -> vector<16x128xf32>
      %c0_28 = arith.constant 0 : index
      %c0_29 = arith.constant 0 : index
      %31 = vector.load %arg10[%c0_28, %c0_29] : memref<1x128xf32, #tpu.memory_space<vmem>>, vector<1x128xf32>
      %32 = vector.broadcast %31 : vector<1x128xf32> to vector<16x128xf32>
      %33 = arith.addf %30, %32 : vector<16x128xf32>
      %cst_30 = arith.constant 0.000000e+00 : f32
      %34 = vector.broadcast %cst_30 : f32 to vector<16x128xf32>
      %35 = arith.maximumf %33, %34 : vector<16x128xf32>
      %36 = arith.truncf %35 : vector<16x128xf32> to vector<16x128xbf16>
      %c0_31 = arith.constant 0 : index
      %c0_32 = arith.constant 0 : index
      %37 = vector.load %arg11[%c0_31, %c0_32] : memref<8x128xbf16, #tpu.memory_space<vmem>>, vector<8x128xbf16>
      %38 = tpu.transpose %36, [1, 0] : vector<16x128xbf16> -> vector<128x16xbf16>
      %cst_33 = arith.constant dense<0.000000e+00> : vector<8x16xf32>
      %39 = tpu.matmul %37, %38, %cst_33 {dimension_numbers = #tpu.dot_dimension_numbers<[1], [0], [0], [1], [0, 0, 1, 1], [], []>} : vector<8x128xbf16>, vector<128x16xbf16>, vector<8x16xf32> -> vector<8x16xf32>
      %40 = vector.extract_strided_slice %39 {offsets = [0, 0], sizes = [1, 16], strides = [1, 1]} : vector<8x16xf32> to vector<1x16xf32>
      %c0_34 = arith.constant 0 : index
      %c0_35 = arith.constant 0 : index
      %41 = vector.load %arg12[%c0_34, %c0_35] : memref<1x16xf32, #tpu.memory_space<vmem>>, vector<1x16xf32>
      %42 = arith.addf %40, %41 : vector<1x16xf32>
      %43 = arith.negf %42 : vector<1x16xf32>
      %44 = math.exp %43 : vector<1x16xf32>
      %cst_36 = arith.constant 1.000000e+00 : f32
      %45 = vector.broadcast %cst_36 : f32 to vector<1x16xf32>
      %46 = arith.addf %45, %44 : vector<1x16xf32>
      %47 = arith.divf %45, %46 : vector<1x16xf32>
      %c0_37 = arith.constant 0 : index
      %c0_38 = arith.constant 0 : index
      %48 = vector.load %arg13[%c0_37, %c0_38] : memref<1x16xf32, #tpu.memory_space<vmem>>, vector<1x16xf32>
      tpu.vector_store %arg13[%c0_37, %c0_38], %47 {strides = array<i32>} : memref<1x16xf32, #tpu.memory_space<vmem>>, vector<1x16xf32>,
    } else {
    }
    return
  }
  func.func @transform_0(%arg0: i32, %arg1: i32) -> (i32, i32) {
    %c0_i32 = arith.constant 0 : i32
    return %arg0, %arg1 : i32, i32
  }
  func.func @transform_1(%arg0: i32, %arg1: i32) -> (i32, i32) {
    %c0_i32 = arith.constant 0 : i32
    %c0_i32_0 = arith.constant 0 : i32
    return %arg0, %c0_i32 : i32, i32
  }
  func.func @transform_2(%arg0: i32, %arg1: i32) -> (i32, i32) {
    %c0_i32 = arith.constant 0 : i32
    %c0_i32_0 = arith.constant 0 : i32
    return %arg1, %c0_i32 : i32, i32
  }
  func.func @transform_3(%arg0: i32, %arg1: i32) -> (i32, i32) {
    %c0_i32 = arith.constant 0 : i32
    %c0_i32_0 = arith.constant 0 : i32
    %c0_i32_1 = arith.constant 0 : i32
    return %c0_i32, %c0_i32_0 : i32, i32
  }
  func.func @transform_4(%arg0: i32, %arg1: i32) -> (i32, i32) {
    %c0_i32 = arith.constant 0 : i32
    %c0_i32_0 = arith.constant 0 : i32
    %c0_i32_1 = arith.constant 0 : i32
    return %c0_i32, %c0_i32_0 : i32, i32
  }
  func.func @transform_5(%arg0: i32, %arg1: i32) -> (i32, i32) {
    %c0_i32 = arith.constant 0 : i32
    %c0_i32_0 = arith.constant 0 : i32
    %c0_i32_1 = arith.constant 0 : i32
    return %c0_i32, %c0_i32_0 : i32, i32
  }
  func.func @transform_6(%arg0: i32, %arg1: i32) -> (i32, i32) {
    %c0_i32 = arith.constant 0 : i32
    %c0_i32_0 = arith.constant 0 : i32
    %c0_i32_1 = arith.constant 0 : i32
    return %c0_i32, %c0_i32_0 : i32, i32
  }
  func.func @transform_7(%arg0: i32, %arg1: i32) -> (i32, i32) {
    %c0_i32 = arith.constant 0 : i32
    %c0_i32_0 = arith.constant 0 : i32
    %c0_i32_1 = arith.constant 0 : i32
    return %c0_i32, %c0_i32_0 : i32, i32
  }
  func.func @transform_8(%arg0: i32, %arg1: i32) -> (i32, i32) {
    %c0_i32 = arith.constant 0 : i32
    %c0_i32_0 = arith.constant 0 : i32
    %c0_i32_1 = arith.constant 0 : i32
    return %c0_i32, %c0_i32_0 : i32, i32
  }
  func.func @transform_9(%arg0: i32, %arg1: i32) -> (i32, i32) {
    %c0_i32 = arith.constant 0 : i32
    %c0_i32_0 = arith.constant 0 : i32
    %c0_i32_1 = arith.constant 0 : i32
    return %c0_i32, %c0_i32_0 : i32, i32
  }
  func.func @transform_10(%arg0: i32, %arg1: i32) -> (i32, i32) {
    %c0_i32 = arith.constant 0 : i32
    %c0_i32_0 = arith.constant 0 : i32
    %c0_i32_1 = arith.constant 0 : i32
    return %c0_i32, %c0_i32_0 : i32, i32
  }
  func.func @transform_11(%arg0: i32, %arg1: i32) -> (i32, i32) {
    %c0_i32 = arith.constant 0 : i32
    %c0_i32_0 = arith.constant 0 : i32
    return %c0_i32, %arg0 : i32, i32
  }
}

</mosaic_0001>

<llo_original>
// kernel: tpu_custom_call.1
$region0: #{tpu_custom_call.1}
  #allocation0 [shape = 'u32[]', space=smem, size = 0x4, offset = 0x4, fixed_abs, tag = 'smem constant byte address 0x4 - core index']
  #allocation1 [shape = 'u32[144,128]{1,0:T(1,128)}', space=vmem, size = 0x12000, scoped, tag = 'internal scratch']
  #allocation2 [shape = 'f32[16,128]{1,0:T(8,128)}', space=vmem, size = 0x2000, scoped, tag = 'scratch operand']
  %s0 = inlined_call_operand.hbm [shape: bf16[16,1024], index: 0, kind: input, shape index: {}]
  %s1 = inlined_call_operand.hbm [shape: bf16[16,128], index: 1, kind: input, shape index: {}]
  %s2 = inlined_call_operand.hbm [shape: bf16[1024,128], index: 2, kind: input, shape index: {}]
  %s3 = inlined_call_operand.hbm [shape: bf16[128,128], index: 3, kind: input, shape index: {}]
  %s4 = inlined_call_operand.hbm [shape: bf16[128,128], index: 4, kind: input, shape index: {}]
  %s5 = inlined_call_operand.hbm [shape: bf16[128,128], index: 5, kind: input, shape index: {}]
  %s6 = inlined_call_operand.vmem [shape: f32[1,128], index: 6, kind: input, shape index: {}]
  %s7 = inlined_call_operand.hbm [shape: bf16[128,128], index: 7, kind: input, shape index: {}]
  %s8 = inlined_call_operand.vmem [shape: f32[1,128], index: 8, kind: input, shape index: {}]
  %s9 = inlined_call_operand.vmem [shape: bf16[8,128], index: 9, kind: input, shape index: {}]
  %s10 = inlined_call_operand.vmem [shape: f32[1,16], index: 10, kind: input, shape index: {}]
  %s11 = inlined_call_operand.hbm [shape: f32[1,16], index: 11, kind: output, shape index: {}]
  %s12 = sld [smem:[#allocation0]]
  $region113: #{tpu_custom_call.1} parent=0
    _
  %s14 = ssub.s32 1, %s12
  %s15 = scalar_select 0, %s14, %s12
  $region1: #{tpu_custom_call.1} parent=0
    #allocation3 [shape = 'u8[32768]{0}', space=vmem, size = 0x8000, scoped, tag = 'input window, operand 0']
    #allocation4 [shape = 's32[2]{0}', space=sflag, size = 0x8, scoped, tag = 'scoped memory for tpu_custom_call.1']
    #allocation5 [shape = 's32[2]{0}', space=sflag, size = 0x8, scoped, tag = 'scoped memory for tpu_custom_call.1']
    #allocation6 [shape = 'u8[4096]{0}', space=vmem, size = 0x1000, scoped, tag = 'input window, operand 1, single buffered']
    #allocation7 [shape = 's32[1]{0}', space=sflag, size = 0x4, scoped, tag = 'scoped memory for tpu_custom_call.1']
    #allocation8 [shape = 'u8[262144]{0}', space=vmem, size = 0x40000, scoped, tag = 'input window, operand 2']
    #allocation9 [shape = 'u8[32768]{0}', space=vmem, size = 0x8000, scoped, tag = 'input window, operand 3, single buffered']
    #allocation10 [shape = 'u8[32768]{0}', space=vmem, size = 0x8000, scoped, tag = 'input window, operand 4, single buffered']
    #allocation11 [shape = 's32[1]{0}', space=sflag, size = 0x4, scoped, tag = 'scoped memory for tpu_custom_call.1']
    #allocation12 [shape = 'u8[32768]{0}', space=vmem, size = 0x8000, scoped, tag = 'input window, operand 5, single buffered']
    #allocation13 [shape = 'u8[32768]{0}', space=vmem, size = 0x8000, scoped, tag = 'input window, operand 7, single buffered']
    #allocation14 [shape = 's32[1]{0}', space=sflag, size = 0x4, scoped, tag = 'scoped memory for tpu_custom_call.1']
    #allocation15 [shape = 'u8[512]{0}', space=vmem, size = 0x400, scoped, tag = 'output window, operand 0, single buffered']
    %16 = vsyncpa [#allocation4], 0
    %s17 = scalar_lea.sflag [#allocation4], 1
    %18 = vsyncpa %s17, 0
    %19 = vsyncpa [#allocation7], 0
    %20 = vsyncpa [#allocation11], 0
    %21 = vsyncpa [#allocation14], 0
    %22 = vsyncpa [#allocation5], 0
    loop: start=0, step=1, limit=4
    $region2: #{tpu_custom_call.1} parent=1 // loop_pre_header
      _
    $region3: #{tpu_custom_call.1} parent=1 // loop_header
      %s24 = sphi 0, %s28
      %p25 = scmp.ge.s32.totalorder %s24, 4
      %s31 = sphi 0, %s43
      %s32 = sphi 0, %s39
      %s33 = sphi 0, %s31
      %s34 = sphi 0, %s32
      %s35 = sphi 0, %s33
      %s36 = sphi 0, %s34
      %s48 = sphi 0, %s50
      %s51 = sphi 0, %s48
      %s52 = sphi 0, %s51
      %s68 = sphi 0, %s52
      %s74 = sphi 0, %s76
      %s77 = sphi 0, %s74
      %s78 = sphi 0, %s77
      %s94 = sphi 0, %s78
      %s100 = sphi 0, %s102
      %s103 = sphi 0, %s100
      %s104 = sphi 0, %s103
      %s120 = sphi 0, %s104
      %s124 = sphi 0, %s124
      %s126 = sphi 0, %s124
      %s127 = sphi 0, %s126
      %s141 = sphi 0, %s127
      %s145 = sphi 0, %s145
      %s147 = sphi 0, %s145
      %s148 = sphi 0, %s147
      %s162 = sphi 0, %s148
      %s166 = sphi 0, %s166
      %s168 = sphi 0, %s166
      %s169 = sphi 0, %s168
      %s183 = sphi 0, %s169
      %s187 = sphi 0, %s187
      %s189 = sphi 0, %s187
      %s190 = sphi 0, %s189
      %s204 = sphi 0, %s190
      %s208 = sphi 0, %s208
      %s210 = sphi 0, %s208
      %s211 = sphi 0, %s210
      %s225 = sphi 0, %s211
      %s229 = sphi 0, %s229
      %s231 = sphi 0, %s229
      %s232 = sphi 0, %s231
      %s246 = sphi 0, %s232
      %s250 = sphi 0, %s250
      %s252 = sphi 0, %s250
      %s253 = sphi 0, %s252
      %s267 = sphi 0, %s253
      %s271 = sphi 0, %s271
      %s273 = sphi 0, %s271
      %s274 = sphi 0, %s273
      %s288 = sphi 0, %s274
      %s294 = sphi 0, %s296
      %s297 = sphi 0, %s294
      %s298 = sphi 0, %s297
      %s314 = sphi 0, %s298
    $region4: #{tpu_custom_call.1} parent=1 // loop_header_branch
      %27 = sbr.rel (%p25) target = $region8
    $region5: #{tpu_custom_call.1} parent=1 // loop_body
      %s29 = ssub.s32 %s24, 1
      %s30 = ssub.s32 %s24, 2
      %s37 = sadd.s32 1, %s32
      %p38 = scmp.ge.s32.totalorder %s37, 2
      %s39 = scalar_select %p38, 0, %s37
      %s40 = sadd.s32 1, %s31
      %s41 = scalar_select %p38, %s40, %s31
      %p42 = scmp.ge.s32.totalorder %s41, 1
      %s43 = scalar_select %p42, 0, %s41
      %s44 = ssub.s32 %s31, %s43
      %s45 = ssub.s32 %s32, %s39
      %s46 = sor.u32 %s44, %s45
      %p47 = scmp.eq.s32.totalorder %s46, 0
      %s49 = sadd.s32 %s48, 1
      %s50 = scalar_select %p47, %s48, %s49
      %p53 = pneg %p47
      %p54 = scmp.eq.s32.totalorder %s24, 1
      %p55 = por %p53, %p54
      %p56 = scmp.ne.s32.totalorder %s48, %s51
      %p57 = scmp.eq.s32.totalorder %s24, 0
      %p58 = por %p56, %p57
      %p59 = scmp.ne.s32.totalorder %s48, %s51
      %p60 = scmp.eq.s32.totalorder %s29, 1
      %p61 = por %p59, %p60
      %p62 = scmp.ne.s32.totalorder %s51, %s52
      %p63 = scmp.eq.s32.totalorder %s29, 0
      %p64 = por %p62, %p63
      %p65 = scmp.ne.s32.totalorder %s51, %s52
      %p66 = scmp.eq.s32.totalorder %s30, 1
      %p67 = por %p65, %p66
      %p69 = scmp.ne.s32.totalorder %s52, %s68
      %p70 = scmp.eq.s32.totalorder %s30, 0
      %p71 = por %p69, %p70
      %s72 = ssub.s32 %s31, %s43
      %p73 = scmp.eq.s32.totalorder %s72, 0
      %s75 = sadd.s32 %s74, 1
      %s76 = scalar_select %p73, %s74, %s75
      %p79 = pneg %p73
      %p80 = scmp.eq.s32.totalorder %s24, 1
      %p81 = por %p79, %p80
      %p82 = scmp.ne.s32.totalorder %s74, %s77
      %p83 = scmp.eq.s32.totalorder %s24, 0
      %p84 = por %p82, %p83
      %p85 = scmp.ne.s32.totalorder %s74, %s77
      %p86 = scmp.eq.s32.totalorder %s29, 1
      %p87 = por %p85, %p86
      %p88 = scmp.ne.s32.totalorder %s77, %s78
      %p89 = scmp.eq.s32.totalorder %s29, 0
      %p90 = por %p88, %p89
      %p91 = scmp.ne.s32.totalorder %s77, %s78
      %p92 = scmp.eq.s32.totalorder %s30, 1
      %p93 = por %p91, %p92
      %p95 = scmp.ne.s32.totalorder %s78, %s94
      %p96 = scmp.eq.s32.totalorder %s30, 0
      %p97 = por %p95, %p96
      %s98 = ssub.s32 %s32, %s39
      %p99 = scmp.eq.s32.totalorder %s98, 0
      %s101 = sadd.s32 %s100, 1
      %s102 = scalar_select %p99, %s100, %s101
      %p105 = pneg %p99
      %p106 = scmp.eq.s32.totalorder %s24, 1
      %p107 = por %p105, %p106
      %p108 = scmp.ne.s32.totalorder %s100, %s103
      %p109 = scmp.eq.s32.totalorder %s24, 0
      %p110 = por %p108, %p109
      %p111 = scmp.ne.s32.totalorder %s100, %s103
      %p112 = scmp.eq.s32.totalorder %s29, 1
      %p113 = por %p111, %p112
      %p114 = scmp.ne.s32.totalorder %s103, %s104
      %p115 = scmp.eq.s32.totalorder %s29, 0
      %p116 = por %p114, %p115
      %p117 = scmp.ne.s32.totalorder %s103, %s104
      %p118 = scmp.eq.s32.totalorder %s30, 1
      %p119 = por %p117, %p118
      %p121 = scmp.ne.s32.totalorder %s104, %s120
      %p122 = scmp.eq.s32.totalorder %s30, 0
      %p123 = por %p121, %p122
      %s125 = sadd.s32 %s124, 1
      %p128 = scmp.eq.s32.totalorder %s24, 1
      %p129 = scmp.ne.s32.totalorder %s124, %s126
      %p130 = scmp.eq.s32.totalorder %s24, 0
      %p131 = por %p129, %p130
      %p132 = scmp.ne.s32.totalorder %s124, %s126
      %p133 = scmp.eq.s32.totalorder %s29, 1
      %p134 = por %p132, %p133
      %p135 = scmp.ne.s32.totalorder %s126, %s127
      %p136 = scmp.eq.s32.totalorder %s29, 0
      %p137 = por %p135, %p136
      %p138 = scmp.ne.s32.totalorder %s126, %s127
      %p139 = scmp.eq.s32.totalorder %s30, 1
      %p140 = por %p138, %p139
      %p142 = scmp.ne.s32.totalorder %s127, %s141
      %p143 = scmp.eq.s32.totalorder %s30, 0
      %p144 = por %p142, %p143
      %s146 = sadd.s32 %s145, 1
      %p149 = scmp.eq.s32.totalorder %s24, 1
      %p150 = scmp.ne.s32.totalorder %s145, %s147
      %p151 = scmp.eq.s32.totalorder %s24, 0
      %p152 = por %p150, %p151
      %p153 = scmp.ne.s32.totalorder %s145, %s147
      %p154 = scmp.eq.s32.totalorder %s29, 1
      %p155 = por %p153, %p154
      %p156 = scmp.ne.s32.totalorder %s147, %s148
      %p157 = scmp.eq.s32.totalorder %s29, 0
      %p158 = por %p156, %p157
      %p159 = scmp.ne.s32.totalorder %s147, %s148
      %p160 = scmp.eq.s32.totalorder %s30, 1
      %p161 = por %p159, %p160
      %p163 = scmp.ne.s32.totalorder %s148, %s162
      %p164 = scmp.eq.s32.totalorder %s30, 0
      %p165 = por %p163, %p164
      %s167 = sadd.s32 %s166, 1
      %p170 = scmp.eq.s32.totalorder %s24, 1
      %p171 = scmp.ne.s32.totalorder %s166, %s168
      %p172 = scmp.eq.s32.totalorder %s24, 0
      %p173 = por %p171, %p172
      %p174 = scmp.ne.s32.totalorder %s166, %s168
      %p175 = scmp.eq.s32.totalorder %s29, 1
      %p176 = por %p174, %p175
      %p177 = scmp.ne.s32.totalorder %s168, %s169
      %p178 = scmp.eq.s32.totalorder %s29, 0
      %p179 = por %p177, %p178
      %p180 = scmp.ne.s32.totalorder %s168, %s169
      %p181 = scmp.eq.s32.totalorder %s30, 1
      %p182 = por %p180, %p181
      %p184 = scmp.ne.s32.totalorder %s169, %s183
      %p185 = scmp.eq.s32.totalorder %s30, 0
      %p186 = por %p184, %p185
      %s188 = sadd.s32 %s187, 1
      %p191 = scmp.eq.s32.totalorder %s24, 1
      %p192 = scmp.ne.s32.totalorder %s187, %s189
      %p193 = scmp.eq.s32.totalorder %s24, 0
      %p194 = por %p192, %p193
      %p195 = scmp.ne.s32.totalorder %s187, %s189
      %p196 = scmp.eq.s32.totalorder %s29, 1
      %p197 = por %p195, %p196
      %p198 = scmp.ne.s32.totalorder %s189, %s190
      %p199 = scmp.eq.s32.totalorder %s29, 0
      %p200 = por %p198, %p199
      %p201 = scmp.ne.s32.totalorder %s189, %s190
      %p202 = scmp.eq.s32.totalorder %s30, 1
      %p203 = por %p201, %p202
      %p205 = scmp.ne.s32.totalorder %s190, %s204
      %p206 = scmp.eq.s32.totalorder %s30, 0
      %p207 = por %p205, %p206
      %s209 = sadd.s32 %s208, 1
      %p212 = scmp.eq.s32.totalorder %s24, 1
      %p213 = scmp.ne.s32.totalorder %s208, %s210
      %p214 = scmp.eq.s32.totalorder %s24, 0
      %p215 = por %p213, %p214
      %p216 = scmp.ne.s32.totalorder %s208, %s210
      %p217 = scmp.eq.s32.totalorder %s29, 1
      %p218 = por %p216, %p217
      %p219 = scmp.ne.s32.totalorder %s210, %s211
      %p220 = scmp.eq.s32.totalorder %s29, 0
      %p221 = por %p219, %p220
      %p222 = scmp.ne.s32.totalorder %s210, %s211
      %p223 = scmp.eq.s32.totalorder %s30, 1
      %p224 = por %p222, %p223
      %p226 = scmp.ne.s32.totalorder %s211, %s225
      %p227 = scmp.eq.s32.totalorder %s30, 0
      %p228 = por %p226, %p227
      %s230 = sadd.s32 %s229, 1
      %p233 = scmp.eq.s32.totalorder %s24, 1
      %p234 = scmp.ne.s32.totalorder %s229, %s231
      %p235 = scmp.eq.s32.totalorder %s24, 0
      %p236 = por %p234, %p235
      %p237 = scmp.ne.s32.totalorder %s229, %s231
      %p238 = scmp.eq.s32.totalorder %s29, 1
      %p239 = por %p237, %p238
      %p240 = scmp.ne.s32.totalorder %s231, %s232
      %p241 = scmp.eq.s32.totalorder %s29, 0
      %p242 = por %p240, %p241
      %p243 = scmp.ne.s32.totalorder %s231, %s232
      %p244 = scmp.eq.s32.totalorder %s30, 1
      %p245 = por %p243, %p244
      %p247 = scmp.ne.s32.totalorder %s232, %s246
      %p248 = scmp.eq.s32.totalorder %s30, 0
      %p249 = por %p247, %p248
      %s251 = sadd.s32 %s250, 1
      %p254 = scmp.eq.s32.totalorder %s24, 1
      %p255 = scmp.ne.s32.totalorder %s250, %s252
      %p256 = scmp.eq.s32.totalorder %s24, 0
      %p257 = por %p255, %p256
      %p258 = scmp.ne.s32.totalorder %s250, %s252
      %p259 = scmp.eq.s32.totalorder %s29, 1
      %p260 = por %p258, %p259
      %p261 = scmp.ne.s32.totalorder %s252, %s253
      %p262 = scmp.eq.s32.totalorder %s29, 0
      %p263 = por %p261, %p262
      %p264 = scmp.ne.s32.totalorder %s252, %s253
      %p265 = scmp.eq.s32.totalorder %s30, 1
      %p266 = por %p264, %p265
      %p268 = scmp.ne.s32.totalorder %s253, %s267
      %p269 = scmp.eq.s32.totalorder %s30, 0
      %p270 = por %p268, %p269
      %s272 = sadd.s32 %s271, 1
      %p275 = scmp.eq.s32.totalorder %s24, 1
      %p276 = scmp.ne.s32.totalorder %s271, %s273
      %p277 = scmp.eq.s32.totalorder %s24, 0
      %p278 = por %p276, %p277
      %p279 = scmp.ne.s32.totalorder %s271, %s273
      %p280 = scmp.eq.s32.totalorder %s29, 1
      %p281 = por %p279, %p280
      %p282 = scmp.ne.s32.totalorder %s273, %s274
      %p283 = scmp.eq.s32.totalorder %s29, 0
      %p284 = por %p282, %p283
      %p285 = scmp.ne.s32.totalorder %s273, %s274
      %p286 = scmp.eq.s32.totalorder %s30, 1
      %p287 = por %p285, %p286
      %p289 = scmp.ne.s32.totalorder %s274, %s288
      %p290 = scmp.eq.s32.totalorder %s30, 0
      %p291 = por %p289, %p290
      %s292 = ssub.s32 %s31, %s43
      %p293 = scmp.eq.s32.totalorder %s292, 0
      %s295 = sadd.s32 %s294, 1
      %s296 = scalar_select %p293, %s294, %s295
      %p299 = pneg %p293
      %p300 = scmp.eq.s32.totalorder %s24, 1
      %p301 = por %p299, %p300
      %p302 = scmp.ne.s32.totalorder %s294, %s297
      %p303 = scmp.eq.s32.totalorder %s24, 0
      %p304 = por %p302, %p303
      %p305 = scmp.ne.s32.totalorder %s294, %s297
      %p306 = scmp.eq.s32.totalorder %s29, 1
      %p307 = por %p305, %p306
      %p308 = scmp.ne.s32.totalorder %s297, %s298
      %p309 = scmp.eq.s32.totalorder %s29, 0
      %p310 = por %p308, %p309
      %p311 = scmp.ne.s32.totalorder %s297, %s298
      %p312 = scmp.eq.s32.totalorder %s30, 1
      %p313 = por %p311, %p312
      %p315 = scmp.ne.s32.totalorder %s298, %s314
      %p316 = scmp.eq.s32.totalorder %s30, 0
      %p317 = por %p315, %p316
      %p318 = scmp.le.s32.totalorder 1, %s24
      %p319 = scmp.lt.s32.totalorder %s24, 3
      %p320 = pnand %p318, %p319
      %p321 = pneg %p320
      // Predicated region
      $region9: #{tpu_custom_call.1} parent=5 // pred_check
        _
      $region10: #{tpu_custom_call.1} parent=5 // pred_check_branch
        %323 = sbr.rel (%p320) target = $region12
      $region11: #{tpu_custom_call.1} parent=5 // pred_region
        %s324 = ssub.s32 %s24, 1
        // Predicated region
        $region13: #{tpu_custom_call.1} parent=11 // pred_check
          %p325 = pneg %p90
        $region14: #{tpu_custom_call.1} parent=11 // pred_check_branch
          %327 = sbr.rel (%p325) target = $region16
        $region15: #{tpu_custom_call.1} parent=11 // pred_region
          %s328 = smul.u32 2, %s33
          %s330 = ssub.s32 128, 128
          %331 = vsyncadd [#allocation7], %s330
          %s332 = smul.addr %s328, 64
          %s333 = scalar_lea.hbm %s1, %s332
          %s334 = sshll.u32 [#allocation6], 4
          %s335 = int_to_ptr.vmem [resolvable:$true] %s334
          %340 = dma.hbm_to_vmem [thread:$0]  %s333, 128, %s335, [#allocation7], 64, 64, 4
        $region16: #{tpu_custom_call.1} parent=11 // pred_fallthru
          _
        // Predicated region
        $region17: #{tpu_custom_call.1} parent=11 // pred_check
          %p341 = pneg %p137
        $region18: #{tpu_custom_call.1} parent=11 // pred_check_branch
          %343 = sbr.rel (%p341) target = $region20
        $region19: #{tpu_custom_call.1} parent=11 // pred_region
          %s345 = ssub.s32 1024, 1024
          %346 = vsyncadd [#allocation7], %s345
          %s347 = sshll.u32 [#allocation9], 4
          %s348 = int_to_ptr.vmem [resolvable:$true] %s347
          %353 = dma.hbm_to_vmem [thread:$0]  %s3, 1024, %s348, [#allocation7], 64, 64, 4
        $region20: #{tpu_custom_call.1} parent=11 // pred_fallthru
          _
        // Predicated region
        $region21: #{tpu_custom_call.1} parent=11 // pred_check
          %p354 = pneg %p158
        $region22: #{tpu_custom_call.1} parent=11 // pred_check_branch
          %356 = sbr.rel (%p354) target = $region24
        $region23: #{tpu_custom_call.1} parent=11 // pred_region
          %s358 = ssub.s32 1024, 1024
          %359 = vsyncadd [#allocation11], %s358
          %s360 = sshll.u32 [#allocation10], 4
          %s361 = int_to_ptr.vmem [resolvable:$true] %s360
          %366 = dma.hbm_to_vmem [thread:$0]  %s4, 1024, %s361, [#allocation11], 64, 64, 4
        $region24: #{tpu_custom_call.1} parent=11 // pred_fallthru
          _
        // Predicated region
        $region25: #{tpu_custom_call.1} parent=11 // pred_check
          %p367 = pneg %p179
        $region26: #{tpu_custom_call.1} parent=11 // pred_check_branch
          %369 = sbr.rel (%p367) target = $region28
        $region27: #{tpu_custom_call.1} parent=11 // pred_region
          %s371 = ssub.s32 1024, 1024
          %372 = vsyncadd [#allocation11], %s371
          %s373 = sshll.u32 [#allocation12], 4
          %s374 = int_to_ptr.vmem [resolvable:$true] %s373
          %379 = dma.hbm_to_vmem [thread:$0]  %s5, 1024, %s374, [#allocation11], 64, 64, 4
        $region28: #{tpu_custom_call.1} parent=11 // pred_fallthru
          _
        // Predicated region
        $region29: #{tpu_custom_call.1} parent=11 // pred_check
          %p380 = pneg %p200
        $region30: #{tpu_custom_call.1} parent=11 // pred_check_branch
          %382 = sbr.rel (%p380) target = $region32
        $region31: #{tpu_custom_call.1} parent=11 // pred_region
          _
        $region32: #{tpu_custom_call.1} parent=11 // pred_fallthru
          _
        // Predicated region
        $region33: #{tpu_custom_call.1} parent=11 // pred_check
          %p383 = pneg %p221
        $region34: #{tpu_custom_call.1} parent=11 // pred_check_branch
          %385 = sbr.rel (%p383) target = $region36
        $region35: #{tpu_custom_call.1} parent=11 // pred_region
          %s387 = ssub.s32 1024, 1024
          %388 = vsyncadd [#allocation14], %s387
          %s389 = sshll.u32 [#allocation13], 4
          %s390 = int_to_ptr.vmem [resolvable:$true] %s389
          %395 = dma.hbm_to_vmem [thread:$0]  %s7, 1024, %s390, [#allocation14], 64, 64, 4
        $region36: #{tpu_custom_call.1} parent=11 // pred_fallthru
          _
        // Predicated region
        $region37: #{tpu_custom_call.1} parent=11 // pred_check
          %p396 = pneg %p242
        $region38: #{tpu_custom_call.1} parent=11 // pred_check_branch
          %398 = sbr.rel (%p396) target = $region40
        $region39: #{tpu_custom_call.1} parent=11 // pred_region
          _
        $region40: #{tpu_custom_call.1} parent=11 // pred_fallthru
          _
        // Predicated region
        $region41: #{tpu_custom_call.1} parent=11 // pred_check
          %p399 = pneg %p263
        $region42: #{tpu_custom_call.1} parent=11 // pred_check_branch
          %401 = sbr.rel (%p399) target = $region44
        $region43: #{tpu_custom_call.1} parent=11 // pred_region
          _
        $region44: #{tpu_custom_call.1} parent=11 // pred_fallthru
          _
        // Predicated region
        $region45: #{tpu_custom_call.1} parent=11 // pred_check
          %p402 = pneg %p284
        $region46: #{tpu_custom_call.1} parent=11 // pred_check_branch
          %404 = sbr.rel (%p402) target = $region48
        $region47: #{tpu_custom_call.1} parent=11 // pred_region
          _
        $region48: #{tpu_custom_call.1} parent=11 // pred_fallthru
          _
      $region12: #{tpu_custom_call.1} parent=5 // pred_fallthru
        _
      %p405 = scmp.lt.s32.totalorder %s24, 2
      // Predicated region
      $region49: #{tpu_custom_call.1} parent=5 // pred_check
        %p406 = pneg %p405
      $region50: #{tpu_custom_call.1} parent=5 // pred_check_branch
        %408 = sbr.rel (%p406) target = $region52
      $region51: #{tpu_custom_call.1} parent=5 // pred_region
        // Predicated region
        $region53: #{tpu_custom_call.1} parent=51 // pred_check
          %p409 = pneg %p58
        $region54: #{tpu_custom_call.1} parent=51 // pred_check_branch
          %411 = sbr.rel (%p409) target = $region56
        $region55: #{tpu_custom_call.1} parent=51 // pred_region
          %s412 = sand.u32 %s24, 1
          %s413 = scalar_lea.sflag [#allocation4], %s412
          %s414 = sand.u32 %s48, 1
          %s415 = smul.addr %s414, 32
          %s416 = scalar_lea.vmem [#allocation3], %s415
          %s417 = smul.u32 2, %s31
          %s418 = smul.u32 4, %s32
          %s420 = ssub.s32 512, 512
          %421 = vsyncadd %s413, %s420
          %s422 = smul.addr %s417, 8
          %s423 = sadd.s32 %s418, %s422
          %s424 = smul.addr %s423, 64
          %s425 = scalar_lea.hbm %s0, %s424
          %s426 = sshll.u32 %s416, 4
          %s427 = int_to_ptr.vmem [resolvable:$true] %s426
          %432 = dma.hbm_to_vmem [thread:$0]  %s425, 512, %s427, %s413, 512, 256, 16
        $region56: #{tpu_custom_call.1} parent=51 // pred_fallthru
          _
        // Predicated region
        $region57: #{tpu_custom_call.1} parent=51 // pred_check
          %p433 = pneg %p110
        $region58: #{tpu_custom_call.1} parent=51 // pred_check_branch
          %435 = sbr.rel (%p433) target = $region60
        $region59: #{tpu_custom_call.1} parent=51 // pred_region
          %s436 = sand.u32 %s24, 1
          %s437 = scalar_lea.sflag [#allocation4], %s436
          %s438 = sand.u32 %s100, 1
          %s439 = smul.addr %s438, 256
          %s440 = scalar_lea.vmem [#allocation8], %s439
          %s441 = smul.u32 64, %s32
          %s443 = ssub.s32 4096, 4096
          %444 = vsyncadd %s437, %s443
          %s445 = smul.addr %s441, 64
          %s446 = scalar_lea.hbm %s2, %s445
          %s447 = sshll.u32 %s440, 4
          %s448 = int_to_ptr.vmem [resolvable:$true] %s447
          %453 = dma.hbm_to_vmem [thread:$0]  %s446, 4096, %s448, %s437, 64, 64, 4
        $region60: #{tpu_custom_call.1} parent=51 // pred_fallthru
          _
      $region52: #{tpu_custom_call.1} parent=5 // pred_fallthru
        _
      %p454 = scmp.le.s32.totalorder 1, %s24
      %p455 = scmp.lt.s32.totalorder %s24, 3
      %p456 = pnand %p454, %p455
      %p457 = pneg %p456
      // Predicated region
      $region61: #{tpu_custom_call.1} parent=5 // pred_check
        _
      $region62: #{tpu_custom_call.1} parent=5 // pred_check_branch
        %459 = sbr.rel (%p456) target = $region64
      $region63: #{tpu_custom_call.1} parent=5 // pred_region
        %s460 = ssub.s32 %s24, 1
        %s461 = sand.u32 %s29, 1
        %s462 = scalar_lea.sflag [#allocation4], %s461
        %s463 = sand.u32 %s51, 1
        %s464 = smul.addr %s463, 32
        %s465 = scalar_lea.vmem [#allocation3], %s464
        // Predicated region
        $region65: #{tpu_custom_call.1} parent=63 // pred_check
          %p466 = pneg %p64
        $region66: #{tpu_custom_call.1} parent=63 // pred_check_branch
          %468 = sbr.rel (%p466) target = $region68
        $region67: #{tpu_custom_call.1} parent=63 // pred_region
          %469 = dma.done %s462, 512
        $region68: #{tpu_custom_call.1} parent=63 // pred_fallthru
          _
        // Predicated region
        $region69: #{tpu_custom_call.1} parent=63 // pred_check
          %p470 = pneg %p90
        $region70: #{tpu_custom_call.1} parent=63 // pred_check_branch
          %472 = sbr.rel (%p470) target = $region72
        $region71: #{tpu_custom_call.1} parent=63 // pred_region
          %473 = dma.done [#allocation7], 128
        $region72: #{tpu_custom_call.1} parent=63 // pred_fallthru
          _
        %s474 = sand.u32 %s29, 1
        %s475 = scalar_lea.sflag [#allocation4], %s474
        %s476 = sand.u32 %s103, 1
        %s477 = smul.addr %s476, 256
        %s478 = scalar_lea.vmem [#allocation8], %s477
        // Predicated region
        $region73: #{tpu_custom_call.1} parent=63 // pred_check
          %p479 = pneg %p116
        $region74: #{tpu_custom_call.1} parent=63 // pred_check_branch
          %481 = sbr.rel (%p479) target = $region76
        $region75: #{tpu_custom_call.1} parent=63 // pred_region
          %482 = dma.done %s475, 4096
        $region76: #{tpu_custom_call.1} parent=63 // pred_fallthru
          _
        // Predicated region
        $region77: #{tpu_custom_call.1} parent=63 // pred_check
          %p483 = pneg %p137
        $region78: #{tpu_custom_call.1} parent=63 // pred_check_branch
          %485 = sbr.rel (%p483) target = $region80
        $region79: #{tpu_custom_call.1} parent=63 // pred_region
          %486 = dma.done [#allocation7], 1024
        $region80: #{tpu_custom_call.1} parent=63 // pred_fallthru
          _
        // Predicated region
        $region81: #{tpu_custom_call.1} parent=63 // pred_check
          %p487 = pneg %p158
        $region82: #{tpu_custom_call.1} parent=63 // pred_check_branch
          %489 = sbr.rel (%p487) target = $region84
        $region83: #{tpu_custom_call.1} parent=63 // pred_region
          %490 = dma.done [#allocation11], 1024
        $region84: #{tpu_custom_call.1} parent=63 // pred_fallthru
          _
        // Predicated region
        $region85: #{tpu_custom_call.1} parent=63 // pred_check
          %p491 = pneg %p179
        $region86: #{tpu_custom_call.1} parent=63 // pred_check_branch
          %493 = sbr.rel (%p491) target = $region88
        $region87: #{tpu_custom_call.1} parent=63 // pred_region
          %494 = dma.done [#allocation11], 1024
        $region88: #{tpu_custom_call.1} parent=63 // pred_fallthru
          _
        // Predicated region
        $region89: #{tpu_custom_call.1} parent=63 // pred_check
          %p495 = pneg %p221
        $region90: #{tpu_custom_call.1} parent=63 // pred_check_branch
          %497 = sbr.rel (%p495) target = $region92
        $region91: #{tpu_custom_call.1} parent=63 // pred_region
          %498 = dma.done [#allocation14], 1024
        $region92: #{tpu_custom_call.1} parent=63 // pred_fallthru
          _
        %s499 = sand.u32 %s29, 1
        %s500 = scalar_lea.sflag [#allocation4], %s499
        %s501 = sand.u32 %s51, 1
        %s502 = smul.addr %s501, 32
        %s503 = scalar_lea.vmem [#allocation3], %s502
        %p504 = pneg %p64
        %p505 = pneg %p61
        %p506 = pneg %p90
        %p507 = pneg %p87
        %s508 = sand.u32 %s29, 1
        %s509 = scalar_lea.sflag [#allocation4], %s508
        %s510 = sand.u32 %s103, 1
        %s511 = smul.addr %s510, 256
        %s512 = scalar_lea.vmem [#allocation8], %s511
        %p513 = pneg %p116
        %p514 = pneg %p113
        %p515 = pneg %p137
        %p516 = pneg %p134
        %p517 = pneg %p158
        %p518 = pneg %p155
        %p519 = pneg %p179
        %p520 = pneg %p176
        %p521 = pneg %p200
        %p522 = pneg %p197
        %p523 = pneg %p221
        %p524 = pneg %p218
        %p525 = pneg %p242
        %p526 = pneg %p239
        %p527 = pneg %p263
        %p528 = pneg %p260
        %p529 = pneg %p284
        %p530 = pneg %p281
        %p531 = pneg %p310
        %p532 = pneg %p307
        %s533 = smul.u32 2, %s33
        %s534 = smul.u32 4, %s34
        %s535 = smul.u32 2, %s33
        %s536 = smul.u32 64, %s34
        %p538 = scmp.eq.s32.totalorder %s34, 0
        // Predicated region
        $region93: #{tpu_custom_call.1} parent=63 // pred_check
          %p539 = pneg %p538
        $region94: #{tpu_custom_call.1} parent=63 // pred_check_branch
          %541 = sbr.rel (%p539) target = $region96
        $region95: #{tpu_custom_call.1} parent=63 // pred_region
          %542 = vst [vmem:[#allocation2] sm:$0xff] 0.0
          %543 = vst [vmem:[#allocation2 + $0x8] sm:$0xff] 0.0
        $region96: #{tpu_custom_call.1} parent=63 // pred_fallthru
          _
        %v544 = vld [vmem:[#allocation2] sm:$0xff]
        %v545 = vld [vmem:[#allocation2 + $0x8] sm:$0xff]
        %v546 = vld [vmem:[%s465] sm:$0xff]
        %v547 = vld [vmem:[%s465 + $0x8] sm:$0xff]
        %v548 = vld [vmem:[%s465 + $0x10] sm:$0xff]
        %v549 = vld [vmem:[%s465 + $0x18] sm:$0xff]
        %v550 = vld [vmem:[%s478] sm:$0xf]
        %v551 = vld [vmem:[%s478 + $0x4] sm:$0xf]
        %v552 = vld [vmem:[%s478 + $0x8] sm:$0xf]
        %v553 = vld [vmem:[%s478 + $0xc] sm:$0xf]
        %v554 = vld [vmem:[%s478 + $0x10] sm:$0xf]
        %v555 = vld [vmem:[%s478 + $0x14] sm:$0xf]
        %v556 = vld [vmem:[%s478 + $0x18] sm:$0xf]
        %v557 = vld [vmem:[%s478 + $0x1c] sm:$0xf]
        %v558 = vld [vmem:[%s478 + $0x20] sm:$0xf]
        %v559 = vld [vmem:[%s478 + $0x24] sm:$0xf]
        %v560 = vld [vmem:[%s478 + $0x28] sm:$0xf]
        %v561 = vld [vmem:[%s478 + $0x2c] sm:$0xf]
        %v562 = vld [vmem:[%s478 + $0x30] sm:$0xf]
        %v563 = vld [vmem:[%s478 + $0x34] sm:$0xf]
        %v564 = vld [vmem:[%s478 + $0x38] sm:$0xf]
        %v565 = vld [vmem:[%s478 + $0x3c] sm:$0xf]
        %v566 = vld [vmem:[%s478 + $0x40] sm:$0xf]
        %v567 = vld [vmem:[%s478 + $0x44] sm:$0xf]
        %v568 = vld [vmem:[%s478 + $0x48] sm:$0xf]
        %v569 = vld [vmem:[%s478 + $0x4c] sm:$0xf]
        %v570 = vld [vmem:[%s478 + $0x50] sm:$0xf]
        %v571 = vld [vmem:[%s478 + $0x54] sm:$0xf]
        %v572 = vld [vmem:[%s478 + $0x58] sm:$0xf]
        %v573 = vld [vmem:[%s478 + $0x5c] sm:$0xf]
        %v574 = vld [vmem:[%s478 + $0x60] sm:$0xf]
        %v575 = vld [vmem:[%s478 + $0x64] sm:$0xf]
        %v576 = vld [vmem:[%s478 + $0x68] sm:$0xf]
        %v577 = vld [vmem:[%s478 + $0x6c] sm:$0xf]
        %v578 = vld [vmem:[%s478 + $0x70] sm:$0xf]
        %v579 = vld [vmem:[%s478 + $0x74] sm:$0xf]
        %v580 = vld [vmem:[%s478 + $0x78] sm:$0xf]
        %v581 = vld [vmem:[%s478 + $0x7c] sm:$0xf]
        %v582 = vld [vmem:[%s478 + $0x80] sm:$0xf]
        %v583 = vld [vmem:[%s478 + $0x84] sm:$0xf]
        %v584 = vld [vmem:[%s478 + $0x88] sm:$0xf]
        %v585 = vld [vmem:[%s478 + $0x8c] sm:$0xf]
        %v586 = vld [vmem:[%s478 + $0x90] sm:$0xf]
        %v587 = vld [vmem:[%s478 + $0x94] sm:$0xf]
        %v588 = vld [vmem:[%s478 + $0x98] sm:$0xf]
        %v589 = vld [vmem:[%s478 + $0x9c] sm:$0xf]
        %v590 = vld [vmem:[%s478 + $0xa0] sm:$0xf]
        %v591 = vld [vmem:[%s478 + $0xa4] sm:$0xf]
        %v592 = vld [vmem:[%s478 + $0xa8] sm:$0xf]
        %v593 = vld [vmem:[%s478 + $0xac] sm:$0xf]
        %v594 = vld [vmem:[%s478 + $0xb0] sm:$0xf]
        %v595 = vld [vmem:[%s478 + $0xb4] sm:$0xf]
        %v596 = vld [vmem:[%s478 + $0xb8] sm:$0xf]
        %v597 = vld [vmem:[%s478 + $0xbc] sm:$0xf]
        %v598 = vld [vmem:[%s478 + $0xc0] sm:$0xf]
        %v599 = vld [vmem:[%s478 + $0xc4] sm:$0xf]
        %v600 = vld [vmem:[%s478 + $0xc8] sm:$0xf]
        %v601 = vld [vmem:[%s478 + $0xcc] sm:$0xf]
        %v602 = vld [vmem:[%s478 + $0xd0] sm:$0xf]
        %v603 = vld [vmem:[%s478 + $0xd4] sm:$0xf]
        %v604 = vld [vmem:[%s478 + $0xd8] sm:$0xf]
        %v605 = vld [vmem:[%s478 + $0xdc] sm:$0xf]
        %v606 = vld [vmem:[%s478 + $0xe0] sm:$0xf]
        %v607 = vld [vmem:[%s478 + $0xe4] sm:$0xf]
        %v608 = vld [vmem:[%s478 + $0xe8] sm:$0xf]
        %v609 = vld [vmem:[%s478 + $0xec] sm:$0xf]
        %v610 = vld [vmem:[%s478 + $0xf0] sm:$0xf]
        %v611 = vld [vmem:[%s478 + $0xf4] sm:$0xf]
        %v612 = vld [vmem:[%s478 + $0xf8] sm:$0xf]
        %v613 = vld [vmem:[%s478 + $0xfc] sm:$0xf]
        %v618 = vunpack.c.l.b16 %v546
        %v619 = vunpack.c.h.b16 %v546
        %v620 = vunpack.c.l.b16 %v547
        %v621 = vunpack.c.h.b16 %v547
        %v622 = vunpack.c.l.b16 %v548
        %v623 = vunpack.c.h.b16 %v548
        %v624 = vunpack.c.l.b16 %v549
        %v625 = vunpack.c.h.b16 %v549
        %v626 = vpack.c.b16 %v622, %v618
        %v627 = vpack.c.b16 %v623, %v619
        %v628 = vpack.c.b16 %v624, %v620
        %v629 = vpack.c.b16 %v625, %v621
        %v698 = vunpack.c.l.b16 %v550
        %v699 = vunpack.c.l.b16 %v551
        %v700 = vunpack.c.l.b16 %v552
        %v701 = vunpack.c.l.b16 %v553
        %v702 = vunpack.c.l.b16 %v554
        %v703 = vunpack.c.l.b16 %v555
        %v704 = vunpack.c.l.b16 %v556
        %v705 = vunpack.c.l.b16 %v557
        %v706 = vunpack.c.l.b16 %v558
        %v707 = vunpack.c.l.b16 %v559
        %v708 = vunpack.c.l.b16 %v560
        %v709 = vunpack.c.l.b16 %v561
        %v710 = vunpack.c.l.b16 %v562
        %v711 = vunpack.c.l.b16 %v563
        %v712 = vunpack.c.l.b16 %v564
        %v713 = vunpack.c.l.b16 %v565
        %v714 = vunpack.c.l.b16 %v566
        %v715 = vunpack.c.l.b16 %v567
        %v716 = vunpack.c.l.b16 %v568
        %v717 = vunpack.c.l.b16 %v569
        %v718 = vunpack.c.l.b16 %v570
        %v719 = vunpack.c.l.b16 %v571
        %v720 = vunpack.c.l.b16 %v572
        %v721 = vunpack.c.l.b16 %v573
        %v722 = vunpack.c.l.b16 %v574
        %v723 = vunpack.c.l.b16 %v575
        %v724 = vunpack.c.l.b16 %v576
        %v725 = vunpack.c.l.b16 %v577
        %v726 = vunpack.c.l.b16 %v578
        %v727 = vunpack.c.l.b16 %v579
        %v728 = vunpack.c.l.b16 %v580
        %v729 = vunpack.c.l.b16 %v581
        %v730 = vunpack.c.l.b16 %v582
        %v731 = vunpack.c.l.b16 %v583
        %v732 = vunpack.c.l.b16 %v584
        %v733 = vunpack.c.l.b16 %v585
        %v734 = vunpack.c.l.b16 %v586
        %v735 = vunpack.c.l.b16 %v587
        %v736 = vunpack.c.l.b16 %v588
        %v737 = vunpack.c.l.b16 %v589
        %v738 = vunpack.c.l.b16 %v590
        %v739 = vunpack.c.l.b16 %v591
        %v740 = vunpack.c.l.b16 %v592
        %v741 = vunpack.c.l.b16 %v593
        %v742 = vunpack.c.l.b16 %v594
        %v743 = vunpack.c.l.b16 %v595
        %v744 = vunpack.c.l.b16 %v596
        %v745 = vunpack.c.l.b16 %v597
        %v746 = vunpack.c.l.b16 %v598
        %v747 = vunpack.c.l.b16 %v599
        %v748 = vunpack.c.l.b16 %v600
        %v749 = vunpack.c.l.b16 %v601
        %v750 = vunpack.c.l.b16 %v602
        %v751 = vunpack.c.l.b16 %v603
        %v752 = vunpack.c.l.b16 %v604
        %v753 = vunpack.c.l.b16 %v605
        %v754 = vunpack.c.l.b16 %v606
        %v755 = vunpack.c.l.b16 %v607
        %v756 = vunpack.c.l.b16 %v608
        %v757 = vunpack.c.l.b16 %v609
        %v758 = vunpack.c.l.b16 %v610
        %v759 = vunpack.c.l.b16 %v611
        %v760 = vunpack.c.l.b16 %v612
        %v761 = vunpack.c.l.b16 %v613
        %v762 = vpack.c.b16 %v699, %v698
        %v763 = vpack.c.b16 %v701, %v700
        %v764 = vpack.c.b16 %v703, %v702
        %v765 = vpack.c.b16 %v705, %v704
        %v766 = vpack.c.b16 %v707, %v706
        %v767 = vpack.c.b16 %v709, %v708
        %v768 = vpack.c.b16 %v711, %v710
        %v769 = vpack.c.b16 %v713, %v712
        %v770 = vpack.c.b16 %v715, %v714
        %v771 = vpack.c.b16 %v717, %v716
        %v772 = vpack.c.b16 %v719, %v718
        %v773 = vpack.c.b16 %v721, %v720
        %v774 = vpack.c.b16 %v723, %v722
        %v775 = vpack.c.b16 %v725, %v724
        %v776 = vpack.c.b16 %v727, %v726
        %v777 = vpack.c.b16 %v729, %v728
        %v778 = vpack.c.b16 %v731, %v730
        %v779 = vpack.c.b16 %v733, %v732
        %v780 = vpack.c.b16 %v735, %v734
        %v781 = vpack.c.b16 %v737, %v736
        %v782 = vpack.c.b16 %v739, %v738
        %v783 = vpack.c.b16 %v741, %v740
        %v784 = vpack.c.b16 %v743, %v742
        %v785 = vpack.c.b16 %v745, %v744
        %v786 = vpack.c.b16 %v747, %v746
        %v787 = vpack.c.b16 %v749, %v748
        %v788 = vpack.c.b16 %v751, %v750
        %v789 = vpack.c.b16 %v753, %v752
        %v790 = vpack.c.b16 %v755, %v754
        %v791 = vpack.c.b16 %v757, %v756
        %v792 = vpack.c.b16 %v759, %v758
        %v793 = vpack.c.b16 %v761, %v760
        %826 = vmatprep.subr.bf16.mxu0 0
        %827 = vmatpush1.bf16.msra.mxu0 %v762
        %828 = vmatprep.subr.bf16.mxu0 0
        %829 = vmatpush1.bf16.msra.mxu0 %v763
        %830 = vmatprep.subr.bf16.mxu0 0
        %831 = vmatpush1.bf16.msra.mxu0 %v764
        %832 = vmatprep.subr.bf16.mxu0 0
        %833 = vmatpush1.bf16.msra.mxu0 %v765
        %834 = vmatprep.subr.bf16.mxu0 0
        %835 = vmatpush1.bf16.msra.mxu0 %v766
        %836 = vmatprep.subr.bf16.mxu0 0
        %837 = vmatpush1.bf16.msra.mxu0 %v767
        %838 = vmatprep.subr.bf16.mxu0 0
        %839 = vmatpush1.bf16.msra.mxu0 %v768
        %840 = vmatprep.subr.bf16.mxu0 0
        %841 = vmatpush1.bf16.msra.mxu0 %v769
        %842 = vmatprep.subr.bf16.mxu0 0
        %843 = vmatpush1.bf16.msra.mxu0 %v770
        %844 = vmatprep.subr.bf16.mxu0 0
        %845 = vmatpush1.bf16.msra.mxu0 %v771
        %846 = vmatprep.subr.bf16.mxu0 0
        %847 = vmatpush1.bf16.msra.mxu0 %v772
        %848 = vmatprep.subr.bf16.mxu0 0
        %849 = vmatpush1.bf16.msra.mxu0 %v773
        %850 = vmatprep.subr.bf16.mxu0 0
        %851 = vmatpush1.bf16.msra.mxu0 %v774
        %852 = vmatprep.subr.bf16.mxu0 0
        %853 = vmatpush1.bf16.msra.mxu0 %v775
        %854 = vmatprep.subr.bf16.mxu0 0
        %855 = vmatpush1.bf16.msra.mxu0 %v776
        %856 = vmatprep.subr.bf16.mxu0 0
        %857 = vmatpush1.bf16.msra.mxu0 %v777
        %858 = vmatprep.mubr.bf16.mxu0 %v627
        %859 = vmatmul.mubr.bf16.gmra.mrb[0].mxu0 %v626
        %v860 = vpop.f32.mrb[0].mxu0
        %v861 = vadd.f32 0.0, %v860
        %v862 = vpop.f32.mrb[0].mxu0
        %v863 = vpop.f32.mrb[0].mxu0
        %v864 = vadd.f32 0.0, %v863
        %v865 = vpop.f32.mrb[0].mxu0
        %866 = vdwg.mxu0
        %867 = vmatprep.subr.bf16.mxu0 0
        %868 = vmatpush1.bf16.msra.mxu0 %v778
        %869 = vmatprep.subr.bf16.mxu0 0
        %870 = vmatpush1.bf16.msra.mxu0 %v779
        %871 = vmatprep.subr.bf16.mxu0 0
        %872 = vmatpush1.bf16.msra.mxu0 %v780
        %873 = vmatprep.subr.bf16.mxu0 0
        %874 = vmatpush1.bf16.msra.mxu0 %v781
        %875 = vmatprep.subr.bf16.mxu0 0
        %876 = vmatpush1.bf16.msra.mxu0 %v782
        %877 = vmatprep.subr.bf16.mxu0 0
        %878 = vmatpush1.bf16.msra.mxu0 %v783
        %879 = vmatprep.subr.bf16.mxu0 0
        %880 = vmatpush1.bf16.msra.mxu0 %v784
        %881 = vmatprep.subr.bf16.mxu0 0
        %882 = vmatpush1.bf16.msra.mxu0 %v785
        %883 = vmatprep.subr.bf16.mxu0 0
        %884 = vmatpush1.bf16.msra.mxu0 %v786
        %885 = vmatprep.subr.bf16.mxu0 0
        %886 = vmatpush1.bf16.msra.mxu0 %v787
        %887 = vmatprep.subr.bf16.mxu0 0
        %888 = vmatpush1.bf16.msra.mxu0 %v788
        %889 = vmatprep.subr.bf16.mxu0 0
        %890 = vmatpush1.bf16.msra.mxu0 %v789
        %891 = vmatprep.subr.bf16.mxu0 0
        %892 = vmatpush1.bf16.msra.mxu0 %v790
        %893 = vmatprep.subr.bf16.mxu0 0
        %894 = vmatpush1.bf16.msra.mxu0 %v791
        %895 = vmatprep.subr.bf16.mxu0 0
        %896 = vmatpush1.bf16.msra.mxu0 %v792
        %897 = vmatprep.subr.bf16.mxu0 0
        %898 = vmatpush1.bf16.msra.mxu0 %v793
        %899 = vmatprep.mubr.bf16.mxu0 %v629
        %900 = vmatmul.mubr.bf16.gmra.mrb[0].mxu0 %v628
        %v901 = vpop.f32.mrb[0].mxu0
        %v902 = vadd.f32 %v861, %v901
        %v903 = vpop.f32.mrb[0].mxu0
        %v904 = vpop.f32.mrb[0].mxu0
        %v905 = vadd.f32 %v864, %v904
        %v906 = vpop.f32.mrb[0].mxu0
        %907 = vdwg.mxu0
        %v908 = vadd.f32 %v544, %v902
        %v909 = vadd.f32 %v545, %v905
        %910 = vst [vmem:[#allocation2] sm:$0xff] %v908
        %911 = vst [vmem:[#allocation2 + $0x8] sm:$0xff] %v909
        %p912 = scmp.eq.s32.totalorder %s34, 1
        // Predicated region
        $region97: #{tpu_custom_call.1} parent=63 // pred_check
          %p913 = pneg %p912
        $region98: #{tpu_custom_call.1} parent=63 // pred_check_branch
          %915 = sbr.rel (%p913) target = $region100
        $region99: #{tpu_custom_call.1} parent=63 // pred_region
          %v916 = vld [vmem:[#allocation2] sm:$0xff]
          %v917 = vld [vmem:[#allocation2 + $0x8] sm:$0xff]
          %v918 = vld [vmem:[#allocation6] sm:$0xf]
          %v919 = vld [vmem:[#allocation6 + $0x4] sm:$0xf]
          %v920 = vld [vmem:[#allocation9] sm:$0xf]
          %v921 = vld [vmem:[#allocation9 + $0x4] sm:$0xf]
          %v922 = vld [vmem:[#allocation9 + $0x8] sm:$0xf]
          %v923 = vld [vmem:[#allocation9 + $0xc] sm:$0xf]
          %v924 = vld [vmem:[#allocation9 + $0x10] sm:$0xf]
          %v925 = vld [vmem:[#allocation9 + $0x14] sm:$0xf]
          %v926 = vld [vmem:[#allocation9 + $0x18] sm:$0xf]
          %v927 = vld [vmem:[#allocation9 + $0x1c] sm:$0xf]
          %v928 = vld [vmem:[#allocation9 + $0x20] sm:$0xf]
          %v929 = vld [vmem:[#allocation9 + $0x24] sm:$0xf]
          %v930 = vld [vmem:[#allocation9 + $0x28] sm:$0xf]
          %v931 = vld [vmem:[#allocation9 + $0x2c] sm:$0xf]
          %v932 = vld [vmem:[#allocation9 + $0x30] sm:$0xf]
          %v933 = vld [vmem:[#allocation9 + $0x34] sm:$0xf]
          %v934 = vld [vmem:[#allocation9 + $0x38] sm:$0xf]
          %v935 = vld [vmem:[#allocation9 + $0x3c] sm:$0xf]
          %v938 = vunpack.c.l.b16 %v918
          %v939 = vunpack.c.l.b16 %v919
          %v940 = vpack.c.b16 %v939, %v938
          %v958 = vunpack.c.l.b16 %v920
          %v959 = vunpack.c.l.b16 %v921
          %v960 = vunpack.c.l.b16 %v922
          %v961 = vunpack.c.l.b16 %v923
          %v962 = vunpack.c.l.b16 %v924
          %v963 = vunpack.c.l.b16 %v925
          %v964 = vunpack.c.l.b16 %v926
          %v965 = vunpack.c.l.b16 %v927
          %v966 = vunpack.c.l.b16 %v928
          %v967 = vunpack.c.l.b16 %v929
          %v968 = vunpack.c.l.b16 %v930
          %v969 = vunpack.c.l.b16 %v931
          %v970 = vunpack.c.l.b16 %v932
          %v971 = vunpack.c.l.b16 %v933
          %v972 = vunpack.c.l.b16 %v934
          %v973 = vunpack.c.l.b16 %v935
          %v974 = vpack.c.b16 %v959, %v958
          %v975 = vpack.c.b16 %v961, %v960
          %v976 = vpack.c.b16 %v963, %v962
          %v977 = vpack.c.b16 %v965, %v964
          %v978 = vpack.c.b16 %v967, %v966
          %v979 = vpack.c.b16 %v969, %v968
          %v980 = vpack.c.b16 %v971, %v970
          %v981 = vpack.c.b16 %v973, %v972
          %990 = vmatprep.subr.bf16.mxu0 0
          %991 = vmatpush1.bf16.msra.mxu0 %v974
          %992 = vmatprep.subr.bf16.mxu0 0
          %993 = vmatpush1.bf16.msra.mxu0 %v975
          %994 = vmatprep.subr.bf16.mxu0 0
          %995 = vmatpush1.bf16.msra.mxu0 %v976
          %996 = vmatprep.subr.bf16.mxu0 0
          %997 = vmatpush1.bf16.msra.mxu0 %v977
          %998 = vmatprep.subr.bf16.mxu0 0
          %999 = vmatpush1.bf16.msra.mxu0 %v978
          %1000 = vmatprep.subr.bf16.mxu0 0
          %1001 = vmatpush1.bf16.msra.mxu0 %v979
          %1002 = vmatprep.subr.bf16.mxu0 0
          %1003 = vmatpush1.bf16.msra.mxu0 %v980
          %1004 = vmatprep.subr.bf16.mxu0 0
          %1005 = vmatpush1.bf16.msra.mxu0 %v981
          %1006 = vmatprep.subr.bf16.mxu0 0
          %1007 = vmatpush1.bf16.msra.mxu0 0
          %1008 = vmatprep.subr.bf16.mxu0 0
          %1009 = vmatpush1.bf16.msra.mxu0 0
          %1010 = vmatprep.subr.bf16.mxu0 0
          %1011 = vmatpush1.bf16.msra.mxu0 0
          %1012 = vmatprep.subr.bf16.mxu0 0
          %1013 = vmatpush1.bf16.msra.mxu0 0
          %1014 = vmatprep.subr.bf16.mxu0 0
          %1015 = vmatpush1.bf16.msra.mxu0 0
          %1016 = vmatprep.subr.bf16.mxu0 0
          %1017 = vmatpush1.bf16.msra.mxu0 0
          %1018 = vmatprep.subr.bf16.mxu0 0
          %1019 = vmatpush1.bf16.msra.mxu0 0
          %1020 = vmatprep.subr.bf16.mxu0 0
          %1021 = vmatpush1.bf16.msra.mxu0 0
          %1022 = vmatprep.mubr.bf16.mxu0 0
          %1023 = vmatmul.mubr.bf16.gmra.mrb[0].mxu0 %v940
          %v1024 = vpop.f32.mrb[0].mxu0
          %v1025 = vadd.f32 0.0, %v1024
          %v1026 = vpop.f32.mrb[0].mxu0
          %v1027 = vpop.f32.mrb[0].mxu0
          %v1028 = vadd.f32 0.0, %v1027
          %v1029 = vpop.f32.mrb[0].mxu0
          %1030 = vdwg.mxu0
          %v1031 = vpack.c.bf16 %v917, %v916
          %v1032 = vld [vmem:[#allocation10] sm:$0xf]
          %v1033 = vld [vmem:[#allocation10 + $0x4] sm:$0xf]
          %v1034 = vld [vmem:[#allocation10 + $0x8] sm:$0xf]
          %v1035 = vld [vmem:[#allocation10 + $0xc] sm:$0xf]
          %v1036 = vld [vmem:[#allocation10 + $0x10] sm:$0xf]
          %v1037 = vld [vmem:[#allocation10 + $0x14] sm:$0xf]
          %v1038 = vld [vmem:[#allocation10 + $0x18] sm:$0xf]
          %v1039 = vld [vmem:[#allocation10 + $0x1c] sm:$0xf]
          %v1040 = vld [vmem:[#allocation10 + $0x20] sm:$0xf]
          %v1041 = vld [vmem:[#allocation10 + $0x24] sm:$0xf]
          %v1042 = vld [vmem:[#allocation10 + $0x28] sm:$0xf]
          %v1043 = vld [vmem:[#allocation10 + $0x2c] sm:$0xf]
          %v1044 = vld [vmem:[#allocation10 + $0x30] sm:$0xf]
          %v1045 = vld [vmem:[#allocation10 + $0x34] sm:$0xf]
          %v1046 = vld [vmem:[#allocation10 + $0x38] sm:$0xf]
          %v1047 = vld [vmem:[#allocation10 + $0x3c] sm:$0xf]
          %v1048 = vpack.c.bf16 %v1028, %v1025
          %v1049 = vld [vmem:[#allocation12] sm:$0xf]
          %v1050 = vld [vmem:[#allocation12 + $0x4] sm:$0xf]
          %v1051 = vld [vmem:[#allocation12 + $0x8] sm:$0xf]
          %v1052 = vld [vmem:[#allocation12 + $0xc] sm:$0xf]
          %v1053 = vld [vmem:[#allocation12 + $0x10] sm:$0xf]
          %v1054 = vld [vmem:[#allocation12 + $0x14] sm:$0xf]
          %v1055 = vld [vmem:[#allocation12 + $0x18] sm:$0xf]
          %v1056 = vld [vmem:[#allocation12 + $0x1c] sm:$0xf]
          %v1057 = vld [vmem:[#allocation12 + $0x20] sm:$0xf]
          %v1058 = vld [vmem:[#allocation12 + $0x24] sm:$0xf]
          %v1059 = vld [vmem:[#allocation12 + $0x28] sm:$0xf]
          %v1060 = vld [vmem:[#allocation12 + $0x2c] sm:$0xf]
          %v1061 = vld [vmem:[#allocation12 + $0x30] sm:$0xf]
          %v1062 = vld [vmem:[#allocation12 + $0x34] sm:$0xf]
          %v1063 = vld [vmem:[#allocation12 + $0x38] sm:$0xf]
          %v1064 = vld [vmem:[#allocation12 + $0x3c] sm:$0xf]
          %v1081 = vunpack.c.l.b16 %v1049
          %v1082 = vunpack.c.l.b16 %v1050
          %v1083 = vunpack.c.l.b16 %v1051
          %v1084 = vunpack.c.l.b16 %v1052
          %v1085 = vunpack.c.l.b16 %v1053
          %v1086 = vunpack.c.l.b16 %v1054
          %v1087 = vunpack.c.l.b16 %v1055
          %v1088 = vunpack.c.l.b16 %v1056
          %v1089 = vunpack.c.l.b16 %v1057
          %v1090 = vunpack.c.l.b16 %v1058
          %v1091 = vunpack.c.l.b16 %v1059
          %v1092 = vunpack.c.l.b16 %v1060
          %v1093 = vunpack.c.l.b16 %v1061
          %v1094 = vunpack.c.l.b16 %v1062
          %v1095 = vunpack.c.l.b16 %v1063
          %v1096 = vunpack.c.l.b16 %v1064
          %v1097 = vpack.c.b16 %v1082, %v1081
          %v1098 = vpack.c.b16 %v1084, %v1083
          %v1099 = vpack.c.b16 %v1086, %v1085
          %v1100 = vpack.c.b16 %v1088, %v1087
          %v1101 = vpack.c.b16 %v1090, %v1089
          %v1102 = vpack.c.b16 %v1092, %v1091
          %v1103 = vpack.c.b16 %v1094, %v1093
          %v1104 = vpack.c.b16 %v1096, %v1095
          %1113 = vmatprep.subr.bf16.mxu0 0
          %1114 = vmatpush1.bf16.msra.mxu0 %v1097
          %1115 = vmatprep.subr.bf16.mxu0 0
          %1116 = vmatpush1.bf16.msra.mxu0 %v1098
          %1117 = vmatprep.subr.bf16.mxu0 0
          %1118 = vmatpush1.bf16.msra.mxu0 %v1099
          %1119 = vmatprep.subr.bf16.mxu0 0
          %1120 = vmatpush1.bf16.msra.mxu0 %v1100
          %1121 = vmatprep.subr.bf16.mxu0 0
          %1122 = vmatpush1.bf16.msra.mxu0 %v1101
          %1123 = vmatprep.subr.bf16.mxu0 0
          %1124 = vmatpush1.bf16.msra.mxu0 %v1102
          %1125 = vmatprep.subr.bf16.mxu0 0
          %1126 = vmatpush1.bf16.msra.mxu0 %v1103
          %1127 = vmatprep.subr.bf16.mxu0 0
          %1128 = vmatpush1.bf16.msra.mxu0 %v1104
          %1129 = vmatprep.subr.bf16.mxu0 0
          %1130 = vmatpush1.bf16.msra.mxu0 0
          %1131 = vmatprep.subr.bf16.mxu0 0
          %1132 = vmatpush1.bf16.msra.mxu0 0
          %1133 = vmatprep.subr.bf16.mxu0 0
          %1134 = vmatpush1.bf16.msra.mxu0 0
          %1135 = vmatprep.subr.bf16.mxu0 0
          %1136 = vmatpush1.bf16.msra.mxu0 0
          %1137 = vmatprep.subr.bf16.mxu0 0
          %1138 = vmatpush1.bf16.msra.mxu0 0
          %1139 = vmatprep.subr.bf16.mxu0 0
          %1140 = vmatpush1.bf16.msra.mxu0 0
          %1141 = vmatprep.subr.bf16.mxu0 0
          %1142 = vmatpush1.bf16.msra.mxu0 0
          %1143 = vmatprep.subr.bf16.mxu0 0
          %1144 = vmatpush1.bf16.msra.mxu0 0
          %1145 = vmatprep.mubr.bf16.mxu0 0
          %1146 = vmatmul.mubr.bf16.gmra.mrb[0].mxu0 %v1048
          %v1147 = vpop.f32.mrb[0].mxu0
          %v1148 = vadd.f32 0.0, %v1147
          %v1149 = vpop.f32.mrb[0].mxu0
          %v1150 = vpop.f32.mrb[0].mxu0
          %v1151 = vadd.f32 0.0, %v1150
          %v1152 = vpop.f32.mrb[0].mxu0
          %1153 = vdwg.mxu0
          %v1170 = vunpack.c.l.b16 %v1032
          %v1171 = vunpack.c.l.b16 %v1033
          %v1172 = vunpack.c.l.b16 %v1034
          %v1173 = vunpack.c.l.b16 %v1035
          %v1174 = vunpack.c.l.b16 %v1036
          %v1175 = vunpack.c.l.b16 %v1037
          %v1176 = vunpack.c.l.b16 %v1038
          %v1177 = vunpack.c.l.b16 %v1039
          %v1178 = vunpack.c.l.b16 %v1040
          %v1179 = vunpack.c.l.b16 %v1041
          %v1180 = vunpack.c.l.b16 %v1042
          %v1181 = vunpack.c.l.b16 %v1043
          %v1182 = vunpack.c.l.b16 %v1044
          %v1183 = vunpack.c.l.b16 %v1045
          %v1184 = vunpack.c.l.b16 %v1046
          %v1185 = vunpack.c.l.b16 %v1047
          %v1186 = vpack.c.b16 %v1171, %v1170
          %v1187 = vpack.c.b16 %v1173, %v1172
          %v1188 = vpack.c.b16 %v1175, %v1174
          %v1189 = vpack.c.b16 %v1177, %v1176
          %v1190 = vpack.c.b16 %v1179, %v1178
          %v1191 = vpack.c.b16 %v1181, %v1180
          %v1192 = vpack.c.b16 %v1183, %v1182
          %v1193 = vpack.c.b16 %v1185, %v1184
          %1202 = vmatprep.subr.bf16.mxu0 0
          %1203 = vmatpush1.bf16.msra.mxu0 %v1186
          %1204 = vmatprep.subr.bf16.mxu0 0
          %1205 = vmatpush1.bf16.msra.mxu0 %v1187
          %1206 = vmatprep.subr.bf16.mxu0 0
          %1207 = vmatpush1.bf16.msra.mxu0 %v1188
          %1208 = vmatprep.subr.bf16.mxu0 0
          %1209 = vmatpush1.bf16.msra.mxu0 %v1189
          %1210 = vmatprep.subr.bf16.mxu0 0
          %1211 = vmatpush1.bf16.msra.mxu0 %v1190
          %1212 = vmatprep.subr.bf16.mxu0 0
          %1213 = vmatpush1.bf16.msra.mxu0 %v1191
          %1214 = vmatprep.subr.bf16.mxu0 0
          %1215 = vmatpush1.bf16.msra.mxu0 %v1192
          %1216 = vmatprep.subr.bf16.mxu0 0
          %1217 = vmatpush1.bf16.msra.mxu0 %v1193
          %1218 = vmatprep.subr.bf16.mxu0 0
          %1219 = vmatpush1.bf16.msra.mxu0 0
          %1220 = vmatprep.subr.bf16.mxu0 0
          %1221 = vmatpush1.bf16.msra.mxu0 0
          %1222 = vmatprep.subr.bf16.mxu0 0
          %1223 = vmatpush1.bf16.msra.mxu0 0
          %1224 = vmatprep.subr.bf16.mxu0 0
          %1225 = vmatpush1.bf16.msra.mxu0 0
          %1226 = vmatprep.subr.bf16.mxu0 0
          %1227 = vmatpush1.bf16.msra.mxu0 0
          %1228 = vmatprep.subr.bf16.mxu0 0
          %1229 = vmatpush1.bf16.msra.mxu0 0
          %1230 = vmatprep.subr.bf16.mxu0 0
          %1231 = vmatpush1.bf16.msra.mxu0 0
          %1232 = vmatprep.subr.bf16.mxu0 0
          %1233 = vmatpush1.bf16.msra.mxu0 0
          %1234 = vmatprep.mubr.bf16.mxu0 0
          %1235 = vmatmul.mubr.bf16.gmra.mrb[0].mxu0 %v1031
          %v1236 = vpop.f32.mrb[0].mxu0
          %v1237 = vadd.f32 %v1148, %v1236
          %v1238 = vpop.f32.mrb[0].mxu0
          %v1239 = vpop.f32.mrb[0].mxu0
          %v1240 = vadd.f32 %v1151, %v1239
          %v1241 = vpop.f32.mrb[0].mxu0
          %1242 = vdwg.mxu0
          %v1243 = vld [vmem:[%s6] sm:$0x1]
          %v1245 = vlaneseq
          %v1246 = vshrl.u32 %v1245, 7
          %v1247 = vsub.s32 0, %v1246
          %v1248 = vrot.slane %v1243, %v1247
          %v1250 = vadd.f32 %v1237, %v1248
          %v1251 = vadd.f32 %v1240, %v1248
          %v1252 = vmax.f32 %v1250, 0.0
          %v1253 = vmax.f32 %v1251, 0.0
          %v1254 = vpack.c.bf16 %v1253, %v1252
          %v1255 = vld [vmem:[#allocation13] sm:$0xf]
          %v1256 = vld [vmem:[#allocation13 + $0x4] sm:$0xf]
          %v1257 = vld [vmem:[#allocation13 + $0x8] sm:$0xf]
          %v1258 = vld [vmem:[#allocation13 + $0xc] sm:$0xf]
          %v1259 = vld [vmem:[#allocation13 + $0x10] sm:$0xf]
          %v1260 = vld [vmem:[#allocation13 + $0x14] sm:$0xf]
          %v1261 = vld [vmem:[#allocation13 + $0x18] sm:$0xf]
          %v1262 = vld [vmem:[#allocation13 + $0x1c] sm:$0xf]
          %v1263 = vld [vmem:[#allocation13 + $0x20] sm:$0xf]
          %v1264 = vld [vmem:[#allocation13 + $0x24] sm:$0xf]
          %v1265 = vld [vmem:[#allocation13 + $0x28] sm:$0xf]
          %v1266 = vld [vmem:[#allocation13 + $0x2c] sm:$0xf]
          %v1267 = vld [vmem:[#allocation13 + $0x30] sm:$0xf]
          %v1268 = vld [vmem:[#allocation13 + $0x34] sm:$0xf]
          %v1269 = vld [vmem:[#allocation13 + $0x38] sm:$0xf]
          %v1270 = vld [vmem:[#allocation13 + $0x3c] sm:$0xf]
          %v1271 = vld [vmem:[%s8] sm:$0x1]
          %v1273 = vlaneseq
          %v1274 = vshrl.u32 %v1273, 7
          %v1275 = vsub.s32 0, %v1274
          %v1276 = vrot.slane %v1271, %v1275
          %v1294 = vunpack.c.l.b16 %v1255
          %v1295 = vunpack.c.l.b16 %v1256
          %v1296 = vunpack.c.l.b16 %v1257
          %v1297 = vunpack.c.l.b16 %v1258
          %v1298 = vunpack.c.l.b16 %v1259
          %v1299 = vunpack.c.l.b16 %v1260
          %v1300 = vunpack.c.l.b16 %v1261
          %v1301 = vunpack.c.l.b16 %v1262
          %v1302 = vunpack.c.l.b16 %v1263
          %v1303 = vunpack.c.l.b16 %v1264
          %v1304 = vunpack.c.l.b16 %v1265
          %v1305 = vunpack.c.l.b16 %v1266
          %v1306 = vunpack.c.l.b16 %v1267
          %v1307 = vunpack.c.l.b16 %v1268
          %v1308 = vunpack.c.l.b16 %v1269
          %v1309 = vunpack.c.l.b16 %v1270
          %v1310 = vpack.c.b16 %v1295, %v1294
          %v1311 = vpack.c.b16 %v1297, %v1296
          %v1312 = vpack.c.b16 %v1299, %v1298
          %v1313 = vpack.c.b16 %v1301, %v1300
          %v1314 = vpack.c.b16 %v1303, %v1302
          %v1315 = vpack.c.b16 %v1305, %v1304
          %v1316 = vpack.c.b16 %v1307, %v1306
          %v1317 = vpack.c.b16 %v1309, %v1308
          %1326 = vmatprep.subr.bf16.mxu0 0
          %1327 = vmatpush1.bf16.msra.mxu0 %v1310
          %1328 = vmatprep.subr.bf16.mxu0 0
          %1329 = vmatpush1.bf16.msra.mxu0 %v1311
          %1330 = vmatprep.subr.bf16.mxu0 0
          %1331 = vmatpush1.bf16.msra.mxu0 %v1312
          %1332 = vmatprep.subr.bf16.mxu0 0
          %1333 = vmatpush1.bf16.msra.mxu0 %v1313
          %1334 = vmatprep.subr.bf16.mxu0 0
          %1335 = vmatpush1.bf16.msra.mxu0 %v1314
          %1336 = vmatprep.subr.bf16.mxu0 0
          %1337 = vmatpush1.bf16.msra.mxu0 %v1315
          %1338 = vmatprep.subr.bf16.mxu0 0
          %1339 = vmatpush1.bf16.msra.mxu0 %v1316
          %1340 = vmatprep.subr.bf16.mxu0 0
          %1341 = vmatpush1.bf16.msra.mxu0 %v1317
          %1342 = vmatprep.subr.bf16.mxu0 0
          %1343 = vmatpush1.bf16.msra.mxu0 0
          %1344 = vmatprep.subr.bf16.mxu0 0
          %1345 = vmatpush1.bf16.msra.mxu0 0
          %1346 = vmatprep.subr.bf16.mxu0 0
          %1347 = vmatpush1.bf16.msra.mxu0 0
          %1348 = vmatprep.subr.bf16.mxu0 0
          %1349 = vmatpush1.bf16.msra.mxu0 0
          %1350 = vmatprep.subr.bf16.mxu0 0
          %1351 = vmatpush1.bf16.msra.mxu0 0
          %1352 = vmatprep.subr.bf16.mxu0 0
          %1353 = vmatpush1.bf16.msra.mxu0 0
          %1354 = vmatprep.subr.bf16.mxu0 0
          %1355 = vmatpush1.bf16.msra.mxu0 0
          %1356 = vmatprep.subr.bf16.mxu0 0
          %1357 = vmatpush1.bf16.msra.mxu0 0
          %1358 = vmatprep.mubr.bf16.mxu0 0
          %1359 = vmatmul.mubr.bf16.gmra.mrb[0].mxu0 %v1254
          %v1360 = vpop.f32.mrb[0].mxu0
          %v1361 = vadd.f32 %v1276, %v1360
          %v1362 = vpop.f32.mrb[0].mxu0
          %v1363 = vpop.f32.mrb[0].mxu0
          %v1364 = vadd.f32 %v1276, %v1363
          %v1365 = vpop.f32.mrb[0].mxu0
          %1366 = vdwg.mxu0
          %v1367 = vmax.f32 %v1361, 0.0
          %v1368 = vmax.f32 %v1364, 0.0
          %v1369 = vpack.c.bf16 %v1368, %v1367
          %v1370 = vld [vmem:[%s9] sm:$0xf]
          %1371 = vmatprep.subr.bf16.mxu0 0
          %1372 = vmatpush1.bf16.xpose.msra.mxu0 %v1369
          %1373 = vmatprep.subr.bf16.mxu0 0
          %1374 = vmatpush1.bf16.xpose.msra.mxu0 0
          %1375 = vmatprep.subr.bf16.mxu0 0
          %1376 = vmatpush1.bf16.xpose.msra.mxu0 0
          %1377 = vmatprep.subr.bf16.mxu0 0
          %1378 = vmatpush1.bf16.xpose.msra.mxu0 0
          %1379 = vmatprep.subr.bf16.mxu0 0
          %1380 = vmatpush1.bf16.xpose.msra.mxu0 0
          %1381 = vmatprep.subr.bf16.mxu0 0
          %1382 = vmatpush1.bf16.xpose.msra.mxu0 0
          %1383 = vmatprep.subr.bf16.mxu0 0
          %1384 = vmatpush1.bf16.xpose.msra.mxu0 0
          %1385 = vmatprep.subr.bf16.mxu0 0
          %1386 = vmatpush1.bf16.xpose.msra.mxu0 0
          %1387 = vmatprep.subr.bf16.mxu0 0
          %1388 = vmatpush1.bf16.xpose.msra.mxu0 0
          %1389 = vmatprep.subr.bf16.mxu0 0
          %1390 = vmatpush1.bf16.xpose.msra.mxu0 0
          %1391 = vmatprep.subr.bf16.mxu0 0
          %1392 = vmatpush1.bf16.xpose.msra.mxu0 0
          %1393 = vmatprep.subr.bf16.mxu0 0
          %1394 = vmatpush1.bf16.xpose.msra.mxu0 0
          %1395 = vmatprep.subr.bf16.mxu0 0
          %1396 = vmatpush1.bf16.xpose.msra.mxu0 0
          %1397 = vmatprep.subr.bf16.mxu0 0
          %1398 = vmatpush1.bf16.xpose.msra.mxu0 0
          %1399 = vmatprep.subr.bf16.mxu0 0
          %1400 = vmatpush1.bf16.xpose.msra.mxu0 0
          %1401 = vmatprep.subr.bf16.mxu0 0
          %1402 = vmatpush1.bf16.xpose.msra.mxu0 0
          %1403 = vmatprep.mubr.bf16.mxu0 0
          %1404 = vmatmul.mubr.bf16.gmra.mrb[0].mxu0 %v1370
          %v1405 = vpop.f32.mrb[0].mxu0
          %v1406 = vadd.f32 0.0, %v1405
          %v1407 = vpop.f32.mrb[0].mxu0
          %v1408 = vpop.f32.mrb[0].mxu0
          %v1409 = vpop.f32.mrb[0].mxu0
          %1410 = vdwg.mxu0
          %v1411 = vld [vmem:[%s10] sm:$0x1]
          %v1412 = vadd.f32 %v1406, %v1411
          %v1413 = vxor.u32 %v1412, 2147483648
          %v1414 = vmul.f32 %v1413, 1.442695
          %v1415 = vpow.pop %v1414
          %v1416 = vadd.f32 %v1415, 1.0
          %v1417 = vrcp.pop %v1416
          %v1418 = vmul.f32 1.0, %v1417
          %vm1419 = vcmask 122880
          %1420 = vst.msk [vmem:[#allocation15] sm:$0x1] %vm1419, %v1418
        $region100: #{tpu_custom_call.1} parent=63 // pred_fallthru
          _
        // Predicated region
        $region101: #{tpu_custom_call.1} parent=63 // pred_check
          %p1421 = pneg %p307
        $region102: #{tpu_custom_call.1} parent=63 // pred_check_branch
          %1423 = sbr.rel (%p1421) target = $region104
        $region103: #{tpu_custom_call.1} parent=63 // pred_region
          %s1425 = ssub.s32 16, 16
          %1426 = vsyncadd [#allocation5], %s1425
          %s1427 = smul.addr %s33, 16
          %s1428 = scalar_lea.hbm %s11, %s1427
          %s1430 = sshll.u32 [#allocation15], 4
          %s1431 = int_to_ptr.vmem [resolvable:$true] %s1430
          %1433 = dma.vmem_to_hbm [thread:$0]  %s1431, 16, %s1428, [#allocation5]
        $region104: #{tpu_custom_call.1} parent=63 // pred_fallthru
          _
        // Predicated region
        $region105: #{tpu_custom_call.1} parent=63 // pred_check
          %p1434 = pneg %p307
        $region106: #{tpu_custom_call.1} parent=63 // pred_check_branch
          %1436 = sbr.rel (%p1434) target = $region108
        $region107: #{tpu_custom_call.1} parent=63 // pred_region
          %1437 = dma.done [#allocation5], 16
        $region108: #{tpu_custom_call.1} parent=63 // pred_fallthru
          _
      $region64: #{tpu_custom_call.1} parent=5 // pred_fallthru
        _
      %p1438 = scmp.le.s32.totalorder 2, %s24
      // Predicated region
      $region109: #{tpu_custom_call.1} parent=5 // pred_check
        %p1439 = pneg %p1438
      $region110: #{tpu_custom_call.1} parent=5 // pred_check_branch
        %1441 = sbr.rel (%p1439) target = $region112
      $region111: #{tpu_custom_call.1} parent=5 // pred_region
        %s1442 = ssub.s32 %s24, 2
      $region112: #{tpu_custom_call.1} parent=5 // pred_fallthru
        _
    $region6: #{tpu_custom_call.1} parent=1 // loop_footer
      %s28 = sadd.s32 1, %s24
    $region7: #{tpu_custom_call.1} parent=1 // loop_footer_branch
      %23 = sbr.rel target = $region3
    $region8: #{tpu_custom_call.1} parent=1 // loop_exit
      _
    %1443 = vsyncpa [#allocation4], 1
    %s1444 = scalar_lea.sflag [#allocation4], 1
    %1445 = vsyncpa %s1444, 1
    %1446 = vsyncpa [#allocation7], 1
    %1447 = vsyncpa [#allocation11], 1
    %1448 = vsyncpa [#allocation14], 1
    %1449 = vsyncpa [#allocation5], 1
    %s1450 = scalar_lea.sflag [#allocation5], 1
    %1451 = vsyncpa %s1450, 1

</llo_original>
